<compile_context>
chip_gen: v5e
topology: v5e:2x2
jax: 0.10.0
libtpu: 0.0.40
codegen_flags: <defaults>
</compile_context>

<pallas_src>
import jax
import jax.numpy as jnp
from jax import lax
from jax.experimental import pallas as pl
from jax.experimental.pallas import tpu as pltpu


def dis_trans_kernel(xq_ref, xk_ref, x1k_ref,
                     wg_ref, bg_ref, wt_ref, bt_ref, wp_ref, bp_ref,
                     wwe_ref, bwe_ref,
                     out_ref,
                     m_sc, l_sc, acc_sc):
    """One (batch, query-tile, key-tile) grid step.

    xq_ref : (C, TQ)    query tile of x   (theta projection + residual)
    xk_ref : (C, TK)    key   tile of x   (g projection)
    x1k_ref: (C, TK)    key   tile of x1  (phi projection)
    wg/wt/wp: (ICP, C)  1x1-conv weights, biases (ICP, 1)   (IC zero-padded)
    wwe    : (C, ICP)   W conv with BN folded in; bwe (C, 1)
    out_ref: (C, TQ)
    scratch: m_sc/l_sc (TQ, 1) f32, acc_sc (TQ, ICP) f32 — online-softmax state.
    """
    ki = pl.program_id(2)

    @pl.when(ki == 0)
    def _init():
        m_sc[...] = jnp.full_like(m_sc, -jnp.inf)
        l_sc[...] = jnp.zeros_like(l_sc)
        acc_sc[...] = jnp.zeros_like(acc_sc)

    # 1x1 convolutions == channels-first matmuls (lane dim = spatial), f32.
    theta_q = jnp.dot(wt_ref[...], xq_ref[...],
                      preferred_element_type=jnp.float32) + bt_ref[...]      # (ICP, TQ)
    g_k = jnp.dot(wg_ref[...], xk_ref[...],
                  preferred_element_type=jnp.float32) + bg_ref[...]          # (ICP, TK)
    phi_k = jnp.dot(wp_ref[...], x1k_ref[...],
                    preferred_element_type=jnp.float32) + bp_ref[...]        # (ICP, TK)

    # f[q, k] = sum_i theta[i, q] * phi[i, k].
    # One cheap (ICP, TQ) -> (TQ, ICP) XLU transpose turns both attention matmuls
    # into MXU-native NN / NT forms; feed the MXU bf16 with f32 accumulation.
    theta_t = jnp.transpose(theta_q)                                         # (TQ, ICP)
    f = jnp.dot(theta_t.astype(jnp.bfloat16), phi_k.astype(jnp.bfloat16),
                preferred_element_type=jnp.float32)                          # (TQ, TK)

    # Online softmax over the key axis (f32 on the VPU/EUP).
    m_prev = m_sc[...]
    m_new = jnp.maximum(m_prev, jnp.max(f, axis=-1, keepdims=True))          # (TQ, 1)
    alpha = jnp.exp(m_prev - m_new)
    p = jnp.exp(f - m_new)                                                   # (TQ, TK)
    l_sc[...] = alpha * l_sc[...] + jnp.sum(p, axis=-1, keepdims=True)

    # acc[q, i] += sum_k p[q, k] * g[i, k]   (NT form, bf16 in / f32 acc)
    pv = lax.dot_general(p.astype(jnp.bfloat16), g_k.astype(jnp.bfloat16),
                         (((1,), (1,)), ((), ())),
                         preferred_element_type=jnp.float32)                 # (TQ, ICP)
    acc_sc[...] = alpha * acc_sc[...] + pv
    m_sc[...] = m_new

    @pl.when(ki == pl.num_programs(2) - 1)
    def _finalize():
        # y = softmax(f) @ g : normalize with an EUP reciprocal, not a divide.
        y = acc_sc[...] * pl.reciprocal(l_sc[...], approx=True)              # (TQ, ICP)
        # W projection (BN folded into wwe/bwe) + residual, channels-first (NT).
        wy = lax.dot_general(wwe_ref[...], y, (((1,), (1,)), ((), ())),
                             preferred_element_type=jnp.float32)             # (C, TQ)
        out_ref[...] = (wy + bwe_ref[...] + xq_ref[...]).astype(out_ref.dtype)


def _round_up(n, m):
    return ((n + m - 1) // m) * m


def dis_trans_block(x, x1, params, *, tq=128, tk=128, eps=1e-5):
    """x, x1: (B, C, H, W) float32 -> z: (B, C, H, W).

    Matches DisTransBlock.forward with the W-path BatchNorm in eval mode using
    default running stats (running_mean=0, running_var=1).  For large HW prefer
    tq/tk in the 256-512 range (must divide HW, else they fall back to HW).
    """
    B, C, H, W = x.shape
    HW = H * W
    IC = params["wg"].shape[0]

    if HW % tq != 0:
        tq = HW
    if HW % tk != 0:
        tk = HW
    nq = HW // tq
    nk = HW // tk

    # NCHW -> channels-first flattened spatial: pure reshape, no transposes.
    xf = x.reshape(B, C, HW)
    x1f = x1.reshape(B, C, HW)

    # Pad the inter-channel dim to a multiple of 8 (zero rows/cols: exact no-op).
    ICP = _round_up(IC, 8)
    pad_ic = ICP - IC

    def pad_w(w):   # (IC, C) -> (ICP, C)
        return jnp.pad(w, ((0, pad_ic), (0, 0)))

    def pad_b(b):   # (IC,) -> (ICP, 1)
        return jnp.pad(b, (0, pad_ic))[:, None]

    wg, bg = pad_w(params["wg"]), pad_b(params["bg"])
    wt, bt = pad_w(params["wt"]), pad_b(params["bt"])
    wp, bp = pad_w(params["wp"]), pad_b(params["bp"])

    # Fold eval-mode BatchNorm into the W conv: bn(v) = gamma*v/sqrt(1+eps)+beta.
    bn_scale = params["gamma"] * (1.0 / jnp.sqrt(1.0 + eps))                 # (C,)
    ww_eff = jnp.pad(params["ww"] * bn_scale[:, None], ((0, 0), (0, pad_ic)))  # (C, ICP)
    bw_eff = (params["bw"] * bn_scale + params["beta"])[:, None]               # (C, 1)

    def rep(shape):
        return pl.BlockSpec(shape, lambda b, qi, ki: (0,) * len(shape))

    q_spec = pl.BlockSpec((pl.Squeezed(), C, tq), lambda b, qi, ki: (b, 0, qi))
    k_spec = pl.BlockSpec((pl.Squeezed(), C, tk), lambda b, qi, ki: (b, 0, ki))
    o_spec = pl.BlockSpec((pl.Squeezed(), C, tq), lambda b, qi, ki: (b, 0, qi))

    cost = pl.CostEstimate(
        flops=int(B * (4 * HW * HW * IC + 8 * HW * C * IC)),
        transcendentals=int(B * HW * HW),
        bytes_accessed=int(4 * (3 * B * C * HW + 4 * IC * C)),
    )

    out = pl.pallas_call(
        dis_trans_kernel,
        out_shape=jax.ShapeDtypeStruct((B, C, HW), jnp.float32),
        grid_spec=pltpu.PrefetchScalarGridSpec(
            num_scalar_prefetch=0,
            grid=(B, nq, nk),
            in_specs=[
                q_spec,                       # x  query tile  (theta + residual)
                k_spec,                       # x  key tile    (g)
                k_spec,                       # x1 key tile    (phi)
                rep((ICP, C)), rep((ICP, 1)),   # g  weights / bias
                rep((ICP, C)), rep((ICP, 1)),   # theta
                rep((ICP, C)), rep((ICP, 1)),   # phi
                rep((C, ICP)), rep((C, 1)),     # W conv (BN folded)
            ],
            out_specs=o_spec,
            scratch_shapes=[
                pltpu.VMEM((tq, 1), jnp.float32),     # running row max
                pltpu.VMEM((tq, 1), jnp.float32),     # running row sum
                pltpu.VMEM((tq, ICP), jnp.float32),   # running p@g accumulator
            ],
        ),
        compiler_params=pltpu.CompilerParams(
            dimension_semantics=("parallel", "parallel", "arbitrary")),
        cost_estimate=cost,
    )(xf, xf, x1f, wg, bg, wt, bt, wp, bp, ww_eff, bw_eff)

    return out.reshape(B, C, H, W)


def reference(x, x1, params, eps=1e-5):
    """Pure-JAX (f32) reference of the same forward, for validation."""
    B, C, H, W = x.shape
    HW = H * W
    xf = x.reshape(B, C, HW)
    x1f = x1.reshape(B, C, HW)
    g_x = jnp.einsum("ic,bch->bih", params["wg"], xf) + params["bg"][None, :, None]
    theta = jnp.einsum("ic,bch->bih", params["wt"], xf) + params["bt"][None, :, None]
    phi = jnp.einsum("ic,bch->bih", params["wp"], x1f) + params["bp"][None, :, None]
    f = jnp.einsum("biq,bik->bqk", theta, phi)
    f_div = jax.nn.softmax(f, axis=-1)
    y = jnp.einsum("bqk,bik->biq", f_div, g_x)
    wy = jnp.einsum("ci,biq->bcq", params["ww"], y) + params["bw"][None, :, None]
    bn_scale = params["gamma"] / jnp.sqrt(1.0 + eps)
    z = bn_scale[None, :, None] * wy + params["beta"][None, :, None] + xf
    return z.reshape(B, C, H, W)


if __name__ == "__main__":
    B, C, H, W = 2, 4, 16, 16
    IC = max(C // 2, 1)   # inter_channels = in_channels // 2

    key = jax.random.PRNGKey(0)
    keys = jax.random.split(key, 12)

    x = jax.random.normal(keys[0], (B, C, H, W), dtype=jnp.float32)
    x1 = jax.random.normal(keys[1], (B, C, H, W), dtype=jnp.float32)

    s = 0.1
    # NOTE: PyTorch __init__ zeroes the W-path BN gamma/beta (so z == x at init).
    # We use non-zero values here so the attention path is actually exercised.
    # Conv weights are stored as (C_out, C_in) of the 1x1 kernels (PyTorch layout).
    params = {
        "wg": s * jax.random.normal(keys[2], (IC, C), dtype=jnp.float32),
        "bg": s * jax.random.normal(keys[3], (IC,), dtype=jnp.float32),
        "wt": s * jax.random.normal(keys[4], (IC, C), dtype=jnp.float32),
        "bt": s * jax.random.normal(keys[5], (IC,), dtype=jnp.float32),
        "wp": s * jax.random.normal(keys[6], (IC, C), dtype=jnp.float32),
        "bp": s * jax.random.normal(keys[7], (IC,), dtype=jnp.float32),
        "ww": s * jax.random.normal(keys[8], (C, IC), dtype=jnp.float32),
        "bw": s * jax.random.normal(keys[9], (C,), dtype=jnp.float32),
        "gamma": 1.0 + s * jax.random.normal(keys[10], (C,), dtype=jnp.float32),
        "beta": s * jax.random.normal(keys[11], (C,), dtype=jnp.float32),
    }
    # TODO(synk): self.lastconv is defined in __init__ but never used in forward; omitted.
    # TODO(synk): sub_sample=True (max-pool on g/phi) branch not implemented (default False).

    z = dis_trans_block(x, x1, params)    # HW=256, TQ=TK=128 -> grid (2, 2, 2)
    z = jax.block_until_ready(z)

    z_ref = reference(x, x1, params)
    assert z.shape == (B, C, H, W)
    max_err = float(jnp.max(jnp.abs(z - z_ref)))
    # bf16 MXU operands + approx reciprocal -> relaxed tolerance vs the f32 reference.
    assert jnp.allclose(z, z_ref, atol=1e-2, rtol=1e-2), f"mismatch vs reference ({max_err})"

    print("KERNEL_OK")
</pallas_src>

<mosaic_0001>
module attributes {stable_mosaic.version = 11 : i64} {
  func.func @dis_trans_kernel(%arg0: i32, %arg1: i32, %arg2: i32, %arg3: memref<1x4x128xf32, #tpu.memory_space<vmem>>, %arg4: memref<1x4x128xf32, #tpu.memory_space<vmem>>, %arg5: memref<1x4x128xf32, #tpu.memory_space<vmem>>, %arg6: memref<8x4xf32, #tpu.memory_space<vmem>>, %arg7: memref<8x1xf32, #tpu.memory_space<vmem>>, %arg8: memref<8x4xf32, #tpu.memory_space<vmem>>, %arg9: memref<8x1xf32, #tpu.memory_space<vmem>>, %arg10: memref<8x4xf32, #tpu.memory_space<vmem>>, %arg11: memref<8x1xf32, #tpu.memory_space<vmem>>, %arg12: memref<4x8xf32, #tpu.memory_space<vmem>>, %arg13: memref<4x1xf32, #tpu.memory_space<vmem>>, %arg14: memref<1x4x128xf32, #tpu.memory_space<vmem>>, %arg15: memref<128x1xf32, #tpu.memory_space<vmem>>, %arg16: memref<128x1xf32, #tpu.memory_space<vmem>>, %arg17: memref<128x8xf32, #tpu.memory_space<vmem>>) attributes {dimension_semantics = [#tpu.dimension_semantics<parallel>, #tpu.dimension_semantics<parallel>, #tpu.dimension_semantics<arbitrary>], iteration_bounds = array<i64: 2, 2, 2>, scalar_prefetch = 0 : i64, scratch_operands = 3 : i64, tpu.core_type = #tpu.core_type<tc>, window_params = [{transform_indices = @transform_0, window_bounds = array<i64: 1, 4, 128>}, {transform_indices = @transform_1, window_bounds = array<i64: 1, 4, 128>}, {transform_indices = @transform_2, window_bounds = array<i64: 1, 4, 128>}, {pipeline_mode = #tpu.pipeline_mode<synchronous>, transform_indices = @transform_3, window_bounds = array<i64: 8, 4>}, {pipeline_mode = #tpu.pipeline_mode<synchronous>, transform_indices = @transform_4, window_bounds = array<i64: 8, 1>}, {pipeline_mode = #tpu.pipeline_mode<synchronous>, transform_indices = @transform_5, window_bounds = array<i64: 8, 4>}, {pipeline_mode = #tpu.pipeline_mode<synchronous>, transform_indices = @transform_6, window_bounds = array<i64: 8, 1>}, {pipeline_mode = #tpu.pipeline_mode<synchronous>, transform_indices = @transform_7, window_bounds = array<i64: 8, 4>}, {pipeline_mode = #tpu.pipeline_mode<synchronous>, transform_indices = @transform_8, window_bounds = array<i64: 8, 1>}, {pipeline_mode = #tpu.pipeline_mode<synchronous>, transform_indices = @transform_9, window_bounds = array<i64: 4, 8>}, {pipeline_mode = #tpu.pipeline_mode<synchronous>, transform_indices = @transform_10, window_bounds = array<i64: 4, 1>}, {transform_indices = @transform_11, window_bounds = array<i64: 1, 4, 128>}]} {
    %c0_i32 = arith.constant 0 : i32
    %0 = arith.cmpi eq, %arg2, %c0_i32 : i32
    %1 = arith.extui %0 : i1 to i32
    %c0_i32_0 = arith.constant 0 : i32
    %2 = arith.cmpi ne, %1, %c0_i32_0 : i32
    scf.if %2 {
      %cst_40 = arith.constant 0xFF800000 : f32
      %55 = vector.broadcast %cst_40 : f32 to vector<128x1xf32>
      %c0_41 = arith.constant 0 : index
      %c0_42 = arith.constant 0 : index
      %56 = vector.load %arg15[%c0_41, %c0_42] : memref<128x1xf32, #tpu.memory_space<vmem>>, vector<128x1xf32>
      tpu.vector_store %arg15[%c0_41, %c0_42], %55 {strides = array<i32>} : memref<128x1xf32, #tpu.memory_space<vmem>>, vector<128x1xf32>,
      %cst_43 = arith.constant 0.000000e+00 : f32
      %57 = vector.broadcast %cst_43 : f32 to vector<128x1xf32>
      %c0_44 = arith.constant 0 : index
      %c0_45 = arith.constant 0 : index
      %58 = vector.load %arg16[%c0_44, %c0_45] : memref<128x1xf32, #tpu.memory_space<vmem>>, vector<128x1xf32>
      tpu.vector_store %arg16[%c0_44, %c0_45], %57 {strides = array<i32>} : memref<128x1xf32, #tpu.memory_space<vmem>>, vector<128x1xf32>,
      %cst_46 = arith.constant 0.000000e+00 : f32
      %59 = vector.broadcast %cst_46 : f32 to vector<128x8xf32>
      %c0_47 = arith.constant 0 : index
      %c0_48 = arith.constant 0 : index
      %60 = vector.load %arg17[%c0_47, %c0_48] : memref<128x8xf32, #tpu.memory_space<vmem>>, vector<128x8xf32>
      tpu.vector_store %arg17[%c0_47, %c0_48], %59 {strides = array<i32>} : memref<128x8xf32, #tpu.memory_space<vmem>>, vector<128x8xf32>,
    } else {
    }
    %c0 = arith.constant 0 : index
    %c0_1 = arith.constant 0 : index
    %3 = vector.load %arg8[%c0, %c0_1] : memref<8x4xf32, #tpu.memory_space<vmem>>, vector<8x4xf32>
    %c0_2 = arith.constant 0 : index
    %c0_3 = arith.constant 0 : index
    %c0_4 = arith.constant 0 : index
    %4 = vector.load %arg3[%c0_2, %c0_3, %c0_4] : memref<1x4x128xf32, #tpu.memory_space<vmem>>, vector<1x4x128xf32>
    %5 = vector.shape_cast %4 : vector<1x4x128xf32> to vector<4x128xf32>
    %cst = arith.constant dense<0.000000e+00> : vector<8x128xf32>
    %6 = tpu.matmul %3, %5, %cst {dimension_numbers = #tpu.dot_dimension_numbers<[1], [0], [0], [1], [0, 0, 1, 1], [], []>} : vector<8x4xf32>, vector<4x128xf32>, vector<8x128xf32> -> vector<8x128xf32>
    %c0_5 = arith.constant 0 : index
    %c0_6 = arith.constant 0 : index
    %7 = vector.load %arg9[%c0_5, %c0_6] : memref<8x1xf32, #tpu.memory_space<vmem>>, vector<8x1xf32>
    %8 = vector.broadcast %7 : vector<8x1xf32> to vector<8x128xf32>
    %9 = arith.addf %6, %8 : vector<8x128xf32>
    %c0_7 = arith.constant 0 : index
    %c0_8 = arith.constant 0 : index
    %10 = vector.load %arg6[%c0_7, %c0_8] : memref<8x4xf32, #tpu.memory_space<vmem>>, vector<8x4xf32>
    %c0_9 = arith.constant 0 : index
    %c0_10 = arith.constant 0 : index
    %c0_11 = arith.constant 0 : index
    %11 = vector.load %arg4[%c0_9, %c0_10, %c0_11] : memref<1x4x128xf32, #tpu.memory_space<vmem>>, vector<1x4x128xf32>
    %12 = vector.shape_cast %11 : vector<1x4x128xf32> to vector<4x128xf32>
    %cst_12 = arith.constant dense<0.000000e+00> : vector<8x128xf32>
    %13 = tpu.matmul %10, %12, %cst_12 {dimension_numbers = #tpu.dot_dimension_numbers<[1], [0], [0], [1], [0, 0, 1, 1], [], []>} : vector<8x4xf32>, vector<4x128xf32>, vector<8x128xf32> -> vector<8x128xf32>
    %c0_13 = arith.constant 0 : index
    %c0_14 = arith.constant 0 : index
    %14 = vector.load %arg7[%c0_13, %c0_14] : memref<8x1xf32, #tpu.memory_space<vmem>>, vector<8x1xf32>
    %15 = vector.broadcast %14 : vector<8x1xf32> to vector<8x128xf32>
    %16 = arith.addf %13, %15 : vector<8x128xf32>
    %c0_15 = arith.constant 0 : index
    %c0_16 = arith.constant 0 : index
    %17 = vector.load %arg10[%c0_15, %c0_16] : memref<8x4xf32, #tpu.memory_space<vmem>>, vector<8x4xf32>
    %c0_17 = arith.constant 0 : index
    %c0_18 = arith.constant 0 : index
    %c0_19 = arith.constant 0 : index
    %18 = vector.load %arg5[%c0_17, %c0_18, %c0_19] : memref<1x4x128xf32, #tpu.memory_space<vmem>>, vector<1x4x128xf32>
    %19 = vector.shape_cast %18 : vector<1x4x128xf32> to vector<4x128xf32>
    %cst_20 = arith.constant dense<0.000000e+00> : vector<8x128xf32>
    %20 = tpu.matmul %17, %19, %cst_20 {dimension_numbers = #tpu.dot_dimension_numbers<[1], [0], [0], [1], [0, 0, 1, 1], [], []>} : vector<8x4xf32>, vector<4x128xf32>, vector<8x128xf32> -> vector<8x128xf32>
    %c0_21 = arith.constant 0 : index
    %c0_22 = arith.constant 0 : index
    %21 = vector.load %arg11[%c0_21, %c0_22] : memref<8x1xf32, #tpu.memory_space<vmem>>, vector<8x1xf32>
    %22 = vector.broadcast %21 : vector<8x1xf32> to vector<8x128xf32>
    %23 = arith.addf %20, %22 : vector<8x128xf32>
    %24 = tpu.transpose %9, [1, 0] : vector<8x128xf32> -> vector<128x8xf32>
    %25 = arith.truncf %24 : vector<128x8xf32> to vector<128x8xbf16>
    %26 = arith.truncf %23 : vector<8x128xf32> to vector<8x128xbf16>
    %cst_23 = arith.constant dense<0.000000e+00> : vector<128x128xf32>
    %27 = tpu.matmul %25, %26, %cst_23 {dimension_numbers = #tpu.dot_dimension_numbers<[1], [0], [0], [1], [0, 0, 1, 1], [], []>} : vector<128x8xbf16>, vector<8x128xbf16>, vector<128x128xf32> -> vector<128x128xf32>
    %c0_24 = arith.constant 0 : index
    %c0_25 = arith.constant 0 : index
    %28 = vector.load %arg15[%c0_24, %c0_25] : memref<128x1xf32, #tpu.memory_space<vmem>>, vector<128x1xf32>
    %cst_26 = arith.constant dense<0xFF800000> : vector<128xf32>
    %29 = vector.multi_reduction <maximumf>, %27, %cst_26 [1] : vector<128x128xf32> to vector<128xf32>
    %30 = vector.shape_cast %29 : vector<128xf32> to vector<128x1xf32>
    %31 = arith.maximumf %28, %30 : vector<128x1xf32>
    %32 = arith.subf %28, %31 : vector<128x1xf32>
    %33 = math.exp %32 : vector<128x1xf32>
    %34 = vector.broadcast %31 : vector<128x1xf32> to vector<128x128xf32>
    %35 = arith.subf %27, %34 : vector<128x128xf32>
    %36 = math.exp %35 : vector<128x128xf32>
    %c0_27 = arith.constant 0 : index
    %c0_28 = arith.constant 0 : index
    %37 = vector.load %arg16[%c0_27, %c0_28] : memref<128x1xf32, #tpu.memory_space<vmem>>, vector<128x1xf32>
    %38 = arith.mulf %33, %37 : vector<128x1xf32>
    %cst_29 = arith.constant dense<0.000000e+00> : vector<128xf32>
    %39 = vector.multi_reduction <add>, %36, %cst_29 [1] : vector<128x128xf32> to vector<128xf32>
    %40 = vector.shape_cast %39 : vector<128xf32> to vector<128x1xf32>
    %41 = arith.addf %38, %40 : vector<128x1xf32>
    %c0_30 = arith.constant 0 : index
    %c0_31 = arith.constant 0 : index
    %42 = vector.load %arg16[%c0_30, %c0_31] : memref<128x1xf32, #tpu.memory_space<vmem>>, vector<128x1xf32>
    tpu.vector_store %arg16[%c0_30, %c0_31], %41 {strides = array<i32>} : memref<128x1xf32, #tpu.memory_space<vmem>>, vector<128x1xf32>,
    %43 = arith.truncf %36 : vector<128x128xf32> to vector<128x128xbf16>
    %44 = arith.truncf %16 : vector<8x128xf32> to vector<8x128xbf16>
    %cst_32 = arith.constant dense<0.000000e+00> : vector<128x8xf32>
    %45 = tpu.matmul %43, %44, %cst_32 {dimension_numbers = #tpu.dot_dimension_numbers<[1], [1], [0], [0], [0, 0, 1, 0], [], []>} : vector<128x128xbf16>, vector<8x128xbf16>, vector<128x8xf32> -> vector<128x8xf32>
    %c0_33 = arith.constant 0 : index
    %c0_34 = arith.constant 0 : index
    %46 = vector.load %arg17[%c0_33, %c0_34] : memref<128x8xf32, #tpu.memory_space<vmem>>, vector<128x8xf32>
    %47 = vector.broadcast %33 : vector<128x1xf32> to vector<128x8xf32>
    %48 = arith.mulf %47, %46 : vector<128x8xf32>
    %49 = arith.addf %48, %45 : vector<128x8xf32>
    %c0_35 = arith.constant 0 : index
    %c0_36 = arith.constant 0 : index
    %50 = vector.load %arg17[%c0_35, %c0_36] : memref<128x8xf32, #tpu.memory_space<vmem>>, vector<128x8xf32>
    tpu.vector_store %arg17[%c0_35, %c0_36], %49 {strides = array<i32>} : memref<128x8xf32, #tpu.memory_space<vmem>>, vector<128x8xf32>,
    %c0_37 = arith.constant 0 : index
    %c0_38 = arith.constant 0 : index
    %51 = vector.load %arg15[%c0_37, %c0_38] : memref<128x1xf32, #tpu.memory_space<vmem>>, vector<128x1xf32>
    tpu.vector_store %arg15[%c0_37, %c0_38], %31 {strides = array<i32>} : memref<128x1xf32, #tpu.memory_space<vmem>>, vector<128x1xf32>,
    %c1_i32 = arith.constant 1 : i32
    %52 = arith.cmpi eq, %arg2, %c1_i32 : i32
    %53 = arith.extui %52 : i1 to i32
    %c0_i32_39 = arith.constant 0 : i32
    %54 = arith.cmpi ne, %53, %c0_i32_39 : i32
    scf.if %54 {
      %c0_40 = arith.constant 0 : index
      %c0_41 = arith.constant 0 : index
      %55 = vector.load %arg17[%c0_40, %c0_41] : memref<128x8xf32, #tpu.memory_space<vmem>>, vector<128x8xf32>
      %c0_42 = arith.constant 0 : index
      %c0_43 = arith.constant 0 : index
      %56 = vector.load %arg16[%c0_42, %c0_43] : memref<128x1xf32, #tpu.memory_space<vmem>>, vector<128x1xf32>
      %57 = tpu.reciprocal %56 {approx = true} : vector<128x1xf32> -> vector<128x1xf32>
      %58 = vector.broadcast %57 : vector<128x1xf32> to vector<128x8xf32>
      %59 = arith.mulf %55, %58 : vector<128x8xf32>
      %c0_44 = arith.constant 0 : index
      %c0_45 = arith.constant 0 : index
      %60 = vector.load %arg12[%c0_44, %c0_45] : memref<4x8xf32, #tpu.memory_space<vmem>>, vector<4x8xf32>
      %cst_46 = arith.constant dense<0.000000e+00> : vector<4x128xf32>
      %61 = tpu.matmul %60, %59, %cst_46 {dimension_numbers = #tpu.dot_dimension_numbers<[1], [1], [0], [0], [0, 0, 1, 0], [], []>} : vector<4x8xf32>, vector<128x8xf32>, vector<4x128xf32> -> vector<4x128xf32>
      %c0_47 = arith.constant 0 : index
      %c0_48 = arith.constant 0 : index
      %62 = vector.load %arg13[%c0_47, %c0_48] : memref<4x1xf32, #tpu.memory_space<vmem>>, vector<4x1xf32>
      %63 = vector.broadcast %62 : vector<4x1xf32> to vector<4x128xf32>
      %64 = arith.addf %61, %63 : vector<4x128xf32>
      %c0_49 = arith.constant 0 : index
      %c0_50 = arith.constant 0 : index
      %c0_51 = arith.constant 0 : index
      %65 = vector.load %arg3[%c0_49, %c0_50, %c0_51] : memref<1x4x128xf32, #tpu.memory_space<vmem>>, vector<1x4x128xf32>
      %66 = vector.shape_cast %65 : vector<1x4x128xf32> to vector<4x128xf32>
      %67 = arith.addf %64, %66 : vector<4x128xf32>
      %c0_52 = arith.constant 0 : index
      %c0_53 = arith.constant 0 : index
      %c0_54 = arith.constant 0 : index
      %68 = vector.load %arg14[%c0_52, %c0_53, %c0_54] : memref<1x4x128xf32, #tpu.memory_space<vmem>>, vector<1x4x128xf32>
      %69 = vector.shape_cast %68 : vector<1x4x128xf32> to vector<4x128xf32>
      %70 = vector.shape_cast %67 : vector<4x128xf32> to vector<1x4x128xf32>
      tpu.vector_store %arg14[%c0_52, %c0_53, %c0_54], %70 {strides = array<i32>} : memref<1x4x128xf32, #tpu.memory_space<vmem>>, vector<1x4x128xf32>,
    } else {
    }
    return
  }
  func.func @transform_0(%arg0: i32, %arg1: i32, %arg2: i32) -> (i32, i32, i32) {
    %c0_i32 = arith.constant 0 : i32
    %c0_i32_0 = arith.constant 0 : i32
    return %arg0, %c0_i32, %arg1 : i32, i32, i32
  }
  func.func @transform_1(%arg0: i32, %arg1: i32, %arg2: i32) -> (i32, i32, i32) {
    %c0_i32 = arith.constant 0 : i32
    %c0_i32_0 = arith.constant 0 : i32
    return %arg0, %c0_i32, %arg2 : i32, i32, i32
  }
  func.func @transform_2(%arg0: i32, %arg1: i32, %arg2: i32) -> (i32, i32, i32) {
    %c0_i32 = arith.constant 0 : i32
    %c0_i32_0 = arith.constant 0 : i32
    return %arg0, %c0_i32, %arg2 : i32, i32, i32
  }
  func.func @transform_3(%arg0: i32, %arg1: i32, %arg2: i32) -> (i32, i32) {
    %c0_i32 = arith.constant 0 : i32
    %c0_i32_0 = arith.constant 0 : i32
    %c0_i32_1 = arith.constant 0 : i32
    return %c0_i32, %c0_i32_0 : i32, i32
  }
  func.func @transform_4(%arg0: i32, %arg1: i32, %arg2: i32) -> (i32, i32) {
    %c0_i32 = arith.constant 0 : i32
    %c0_i32_0 = arith.constant 0 : i32
    %c0_i32_1 = arith.constant 0 : i32
    return %c0_i32, %c0_i32_0 : i32, i32
  }
  func.func @transform_5(%arg0: i32, %arg1: i32, %arg2: i32) -> (i32, i32) {
    %c0_i32 = arith.constant 0 : i32
    %c0_i32_0 = arith.constant 0 : i32
    %c0_i32_1 = arith.constant 0 : i32
    return %c0_i32, %c0_i32_0 : i32, i32
  }
  func.func @transform_6(%arg0: i32, %arg1: i32, %arg2: i32) -> (i32, i32) {
    %c0_i32 = arith.constant 0 : i32
    %c0_i32_0 = arith.constant 0 : i32
    %c0_i32_1 = arith.constant 0 : i32
    return %c0_i32, %c0_i32_0 : i32, i32
  }
  func.func @transform_7(%arg0: i32, %arg1: i32, %arg2: i32) -> (i32, i32) {
    %c0_i32 = arith.constant 0 : i32
    %c0_i32_0 = arith.constant 0 : i32
    %c0_i32_1 = arith.constant 0 : i32
    return %c0_i32, %c0_i32_0 : i32, i32
  }
  func.func @transform_8(%arg0: i32, %arg1: i32, %arg2: i32) -> (i32, i32) {
    %c0_i32 = arith.constant 0 : i32
    %c0_i32_0 = arith.constant 0 : i32
    %c0_i32_1 = arith.constant 0 : i32
    return %c0_i32, %c0_i32_0 : i32, i32
  }
  func.func @transform_9(%arg0: i32, %arg1: i32, %arg2: i32) -> (i32, i32) {
    %c0_i32 = arith.constant 0 : i32
    %c0_i32_0 = arith.constant 0 : i32
    %c0_i32_1 = arith.constant 0 : i32
    return %c0_i32, %c0_i32_0 : i32, i32
  }
  func.func @transform_10(%arg0: i32, %arg1: i32, %arg2: i32) -> (i32, i32) {
    %c0_i32 = arith.constant 0 : i32
    %c0_i32_0 = arith.constant 0 : i32
    %c0_i32_1 = arith.constant 0 : i32
    return %c0_i32, %c0_i32_0 : i32, i32
  }
  func.func @transform_11(%arg0: i32, %arg1: i32, %arg2: i32) -> (i32, i32, i32) {
    %c0_i32 = arith.constant 0 : i32
    %c0_i32_0 = arith.constant 0 : i32
    return %arg0, %c0_i32, %arg1 : i32, i32, i32
  }
}

</mosaic_0001>

<llo_original>
// kernel: tpu_custom_call.1
$region0: #{tpu_custom_call.1}
  #allocation0 [shape = 'u32[]', space=smem, size = 0x4, offset = 0x4, fixed_abs, tag = 'smem constant byte address 0x4 - core index']
  #allocation1 [shape = 'u32[72,128]{1,0:T(1,128)}', space=vmem, size = 0x9000, scoped, tag = 'internal scratch']
  #allocation2 [shape = 'f32[128,1]{1,0:T(8,128)}', space=vmem, size = 0x10000, scoped, tag = 'scratch operand']
  #allocation3 [shape = 'f32[128,1]{1,0:T(8,128)}', space=vmem, size = 0x10000, scoped, tag = 'scratch operand']
  #allocation4 [shape = 'f32[128,8]{1,0:T(8,128)}', space=vmem, size = 0x10000, scoped, tag = 'scratch operand']
  %s0 = inlined_call_operand.vmem [shape: f32[2,4,256], index: 0, kind: input, shape index: {}]
  %s1 = inlined_call_operand.vmem [shape: f32[2,4,256], index: 1, kind: input, shape index: {}]
  %s2 = inlined_call_operand.hbm [shape: f32[2,4,256], index: 2, kind: input, shape index: {}]
  %s3 = inlined_call_operand.vmem [shape: f32[8,4], index: 3, kind: input, shape index: {}]
  %s4 = inlined_call_operand.vmem [shape: f32[8,1], index: 4, kind: input, shape index: {}]
  %s5 = inlined_call_operand.vmem [shape: f32[8,4], index: 5, kind: input, shape index: {}]
  %s6 = inlined_call_operand.vmem [shape: f32[8,1], index: 6, kind: input, shape index: {}]
  %s7 = inlined_call_operand.vmem [shape: f32[8,4], index: 7, kind: input, shape index: {}]
  %s8 = inlined_call_operand.vmem [shape: f32[8,1], index: 8, kind: input, shape index: {}]
  %s9 = inlined_call_operand.vmem [shape: f32[4,8], index: 9, kind: input, shape index: {}]
  %s10 = inlined_call_operand.vmem [shape: f32[4,1], index: 10, kind: input, shape index: {}]
  %s11 = inlined_call_operand.hbm [shape: f32[2,4,256], index: 11, kind: output, shape index: {}]
  %s12 = sld [smem:[#allocation0]]
  $region89: #{tpu_custom_call.1} parent=0
    _
  %s14 = ssub.s32 1, %s12
  %s15 = scalar_select 0, %s14, %s12
  $region1: #{tpu_custom_call.1} parent=0
    #allocation5 [shape = 'u8[4096]{0}', space=vmem, size = 0x1000, scoped, tag = 'input window, operand 2']
    #allocation6 [shape = 's32[2]{0}', space=sflag, size = 0x8, scoped, tag = 'scoped memory for tpu_custom_call.1']
    #allocation7 [shape = 's32[2]{0}', space=sflag, size = 0x8, scoped, tag = 'scoped memory for tpu_custom_call.1']
    #allocation8 [shape = 'u8[4096]{0}', space=vmem, size = 0x1000, scoped, tag = 'output window, operand 0']
    %16 = vsyncpa [#allocation6], 0
    %s17 = scalar_lea.sflag [#allocation6], 1
    %18 = vsyncpa %s17, 0
    %19 = vsyncpa [#allocation7], 0
    %s20 = scalar_lea.sflag [#allocation7], 1
    %21 = vsyncpa %s20, 0
    loop: start=0, step=1, limit=10
    $region2: #{tpu_custom_call.1} parent=1 // loop_pre_header
      _
    $region3: #{tpu_custom_call.1} parent=1 // loop_header
      %s23 = sphi 0, %s27
      %p24 = scmp.ge.s32.totalorder %s23, 10
      %s30 = sphi 0, %s49
      %s31 = sphi 0, %s45
      %s32 = sphi 0, %s41
      %s33 = sphi 0, %s30
      %s34 = sphi 0, %s31
      %s35 = sphi 0, %s32
      %s36 = sphi 0, %s33
      %s37 = sphi 0, %s34
      %s38 = sphi 0, %s35
      %s54 = sphi 0, %s56
      %s57 = sphi 0, %s54
      %s58 = sphi 0, %s57
      %s74 = sphi 0, %s58
      %s82 = sphi 0, %s84
      %s85 = sphi 0, %s82
      %s86 = sphi 0, %s85
      %s102 = sphi 0, %s86
      %s110 = sphi 0, %s112
      %s113 = sphi 0, %s110
      %s114 = sphi 0, %s113
      %s130 = sphi 0, %s114
      %s134 = sphi 0, %s134
      %s136 = sphi 0, %s134
      %s137 = sphi 0, %s136
      %s151 = sphi 0, %s137
      %s155 = sphi 0, %s155
      %s157 = sphi 0, %s155
      %s158 = sphi 0, %s157
      %s172 = sphi 0, %s158
      %s176 = sphi 0, %s176
      %s178 = sphi 0, %s176
      %s179 = sphi 0, %s178
      %s193 = sphi 0, %s179
      %s197 = sphi 0, %s197
      %s199 = sphi 0, %s197
      %s200 = sphi 0, %s199
      %s214 = sphi 0, %s200
      %s218 = sphi 0, %s218
      %s220 = sphi 0, %s218
      %s221 = sphi 0, %s220
      %s235 = sphi 0, %s221
      %s239 = sphi 0, %s239
      %s241 = sphi 0, %s239
      %s242 = sphi 0, %s241
      %s256 = sphi 0, %s242
      %s260 = sphi 0, %s260
      %s262 = sphi 0, %s260
      %s263 = sphi 0, %s262
      %s277 = sphi 0, %s263
      %s281 = sphi 0, %s281
      %s283 = sphi 0, %s281
      %s284 = sphi 0, %s283
      %s298 = sphi 0, %s284
      %s306 = sphi 0, %s308
      %s309 = sphi 0, %s306
      %s310 = sphi 0, %s309
      %s326 = sphi 0, %s310
    $region4: #{tpu_custom_call.1} parent=1 // loop_header_branch
      %26 = sbr.rel (%p24) target = $region8
    $region5: #{tpu_custom_call.1} parent=1 // loop_body
      %s28 = ssub.s32 %s23, 1
      %s29 = ssub.s32 %s23, 2
      %s39 = sadd.s32 1, %s32
      %p40 = scmp.ge.s32.totalorder %s39, 2
      %s41 = scalar_select %p40, 0, %s39
      %s42 = sadd.s32 1, %s31
      %s43 = scalar_select %p40, %s42, %s31
      %p44 = scmp.ge.s32.totalorder %s43, 2
      %s45 = scalar_select %p44, 0, %s43
      %s46 = sadd.s32 1, %s30
      %s47 = scalar_select %p44, %s46, %s30
      %p48 = scmp.ge.s32.totalorder %s47, 2
      %s49 = scalar_select %p48, 0, %s47
      %s50 = ssub.s32 %s30, %s49
      %s51 = ssub.s32 %s31, %s45
      %s52 = sor.u32 %s50, %s51
      %p53 = scmp.eq.s32.totalorder %s52, 0
      %s55 = sadd.s32 %s54, 1
      %s56 = scalar_select %p53, %s54, %s55
      %p59 = pneg %p53
      %p60 = scmp.eq.s32.totalorder %s23, 7
      %p61 = por %p59, %p60
      %p62 = scmp.ne.s32.totalorder %s54, %s57
      %p63 = scmp.eq.s32.totalorder %s23, 0
      %p64 = por %p62, %p63
      %p65 = scmp.ne.s32.totalorder %s54, %s57
      %p66 = scmp.eq.s32.totalorder %s28, 7
      %p67 = por %p65, %p66
      %p68 = scmp.ne.s32.totalorder %s57, %s58
      %p69 = scmp.eq.s32.totalorder %s28, 0
      %p70 = por %p68, %p69
      %p71 = scmp.ne.s32.totalorder %s57, %s58
      %p72 = scmp.eq.s32.totalorder %s29, 7
      %p73 = por %p71, %p72
      %p75 = scmp.ne.s32.totalorder %s58, %s74
      %p76 = scmp.eq.s32.totalorder %s29, 0
      %p77 = por %p75, %p76
      %s78 = ssub.s32 %s30, %s49
      %s79 = ssub.s32 %s32, %s41
      %s80 = sor.u32 %s78, %s79
      %p81 = scmp.eq.s32.totalorder %s80, 0
      %s83 = sadd.s32 %s82, 1
      %s84 = scalar_select %p81, %s82, %s83
      %p87 = pneg %p81
      %p88 = scmp.eq.s32.totalorder %s23, 7
      %p89 = por %p87, %p88
      %p90 = scmp.ne.s32.totalorder %s82, %s85
      %p91 = scmp.eq.s32.totalorder %s23, 0
      %p92 = por %p90, %p91
      %p93 = scmp.ne.s32.totalorder %s82, %s85
      %p94 = scmp.eq.s32.totalorder %s28, 7
      %p95 = por %p93, %p94
      %p96 = scmp.ne.s32.totalorder %s85, %s86
      %p97 = scmp.eq.s32.totalorder %s28, 0
      %p98 = por %p96, %p97
      %p99 = scmp.ne.s32.totalorder %s85, %s86
      %p100 = scmp.eq.s32.totalorder %s29, 7
      %p101 = por %p99, %p100
      %p103 = scmp.ne.s32.totalorder %s86, %s102
      %p104 = scmp.eq.s32.totalorder %s29, 0
      %p105 = por %p103, %p104
      %s106 = ssub.s32 %s30, %s49
      %s107 = ssub.s32 %s32, %s41
      %s108 = sor.u32 %s106, %s107
      %p109 = scmp.eq.s32.totalorder %s108, 0
      %s111 = sadd.s32 %s110, 1
      %s112 = scalar_select %p109, %s110, %s111
      %p115 = pneg %p109
      %p116 = scmp.eq.s32.totalorder %s23, 7
      %p117 = por %p115, %p116
      %p118 = scmp.ne.s32.totalorder %s110, %s113
      %p119 = scmp.eq.s32.totalorder %s23, 0
      %p120 = por %p118, %p119
      %p121 = scmp.ne.s32.totalorder %s110, %s113
      %p122 = scmp.eq.s32.totalorder %s28, 7
      %p123 = por %p121, %p122
      %p124 = scmp.ne.s32.totalorder %s113, %s114
      %p125 = scmp.eq.s32.totalorder %s28, 0
      %p126 = por %p124, %p125
      %p127 = scmp.ne.s32.totalorder %s113, %s114
      %p128 = scmp.eq.s32.totalorder %s29, 7
      %p129 = por %p127, %p128
      %p131 = scmp.ne.s32.totalorder %s114, %s130
      %p132 = scmp.eq.s32.totalorder %s29, 0
      %p133 = por %p131, %p132
      %s135 = sadd.s32 %s134, 1
      %p138 = scmp.eq.s32.totalorder %s23, 7
      %p139 = scmp.ne.s32.totalorder %s134, %s136
      %p140 = scmp.eq.s32.totalorder %s23, 0
      %p141 = por %p139, %p140
      %p142 = scmp.ne.s32.totalorder %s134, %s136
      %p143 = scmp.eq.s32.totalorder %s28, 7
      %p144 = por %p142, %p143
      %p145 = scmp.ne.s32.totalorder %s136, %s137
      %p146 = scmp.eq.s32.totalorder %s28, 0
      %p147 = por %p145, %p146
      %p148 = scmp.ne.s32.totalorder %s136, %s137
      %p149 = scmp.eq.s32.totalorder %s29, 7
      %p150 = por %p148, %p149
      %p152 = scmp.ne.s32.totalorder %s137, %s151
      %p153 = scmp.eq.s32.totalorder %s29, 0
      %p154 = por %p152, %p153
      %s156 = sadd.s32 %s155, 1
      %p159 = scmp.eq.s32.totalorder %s23, 7
      %p160 = scmp.ne.s32.totalorder %s155, %s157
      %p161 = scmp.eq.s32.totalorder %s23, 0
      %p162 = por %p160, %p161
      %p163 = scmp.ne.s32.totalorder %s155, %s157
      %p164 = scmp.eq.s32.totalorder %s28, 7
      %p165 = por %p163, %p164
      %p166 = scmp.ne.s32.totalorder %s157, %s158
      %p167 = scmp.eq.s32.totalorder %s28, 0
      %p168 = por %p166, %p167
      %p169 = scmp.ne.s32.totalorder %s157, %s158
      %p170 = scmp.eq.s32.totalorder %s29, 7
      %p171 = por %p169, %p170
      %p173 = scmp.ne.s32.totalorder %s158, %s172
      %p174 = scmp.eq.s32.totalorder %s29, 0
      %p175 = por %p173, %p174
      %s177 = sadd.s32 %s176, 1
      %p180 = scmp.eq.s32.totalorder %s23, 7
      %p181 = scmp.ne.s32.totalorder %s176, %s178
      %p182 = scmp.eq.s32.totalorder %s23, 0
      %p183 = por %p181, %p182
      %p184 = scmp.ne.s32.totalorder %s176, %s178
      %p185 = scmp.eq.s32.totalorder %s28, 7
      %p186 = por %p184, %p185
      %p187 = scmp.ne.s32.totalorder %s178, %s179
      %p188 = scmp.eq.s32.totalorder %s28, 0
      %p189 = por %p187, %p188
      %p190 = scmp.ne.s32.totalorder %s178, %s179
      %p191 = scmp.eq.s32.totalorder %s29, 7
      %p192 = por %p190, %p191
      %p194 = scmp.ne.s32.totalorder %s179, %s193
      %p195 = scmp.eq.s32.totalorder %s29, 0
      %p196 = por %p194, %p195
      %s198 = sadd.s32 %s197, 1
      %p201 = scmp.eq.s32.totalorder %s23, 7
      %p202 = scmp.ne.s32.totalorder %s197, %s199
      %p203 = scmp.eq.s32.totalorder %s23, 0
      %p204 = por %p202, %p203
      %p205 = scmp.ne.s32.totalorder %s197, %s199
      %p206 = scmp.eq.s32.totalorder %s28, 7
      %p207 = por %p205, %p206
      %p208 = scmp.ne.s32.totalorder %s199, %s200
      %p209 = scmp.eq.s32.totalorder %s28, 0
      %p210 = por %p208, %p209
      %p211 = scmp.ne.s32.totalorder %s199, %s200
      %p212 = scmp.eq.s32.totalorder %s29, 7
      %p213 = por %p211, %p212
      %p215 = scmp.ne.s32.totalorder %s200, %s214
      %p216 = scmp.eq.s32.totalorder %s29, 0
      %p217 = por %p215, %p216
      %s219 = sadd.s32 %s218, 1
      %p222 = scmp.eq.s32.totalorder %s23, 7
      %p223 = scmp.ne.s32.totalorder %s218, %s220
      %p224 = scmp.eq.s32.totalorder %s23, 0
      %p225 = por %p223, %p224
      %p226 = scmp.ne.s32.totalorder %s218, %s220
      %p227 = scmp.eq.s32.totalorder %s28, 7
      %p228 = por %p226, %p227
      %p229 = scmp.ne.s32.totalorder %s220, %s221
      %p230 = scmp.eq.s32.totalorder %s28, 0
      %p231 = por %p229, %p230
      %p232 = scmp.ne.s32.totalorder %s220, %s221
      %p233 = scmp.eq.s32.totalorder %s29, 7
      %p234 = por %p232, %p233
      %p236 = scmp.ne.s32.totalorder %s221, %s235
      %p237 = scmp.eq.s32.totalorder %s29, 0
      %p238 = por %p236, %p237
      %s240 = sadd.s32 %s239, 1
      %p243 = scmp.eq.s32.totalorder %s23, 7
      %p244 = scmp.ne.s32.totalorder %s239, %s241
      %p245 = scmp.eq.s32.totalorder %s23, 0
      %p246 = por %p244, %p245
      %p247 = scmp.ne.s32.totalorder %s239, %s241
      %p248 = scmp.eq.s32.totalorder %s28, 7
      %p249 = por %p247, %p248
      %p250 = scmp.ne.s32.totalorder %s241, %s242
      %p251 = scmp.eq.s32.totalorder %s28, 0
      %p252 = por %p250, %p251
      %p253 = scmp.ne.s32.totalorder %s241, %s242
      %p254 = scmp.eq.s32.totalorder %s29, 7
      %p255 = por %p253, %p254
      %p257 = scmp.ne.s32.totalorder %s242, %s256
      %p258 = scmp.eq.s32.totalorder %s29, 0
      %p259 = por %p257, %p258
      %s261 = sadd.s32 %s260, 1
      %p264 = scmp.eq.s32.totalorder %s23, 7
      %p265 = scmp.ne.s32.totalorder %s260, %s262
      %p266 = scmp.eq.s32.totalorder %s23, 0
      %p267 = por %p265, %p266
      %p268 = scmp.ne.s32.totalorder %s260, %s262
      %p269 = scmp.eq.s32.totalorder %s28, 7
      %p270 = por %p268, %p269
      %p271 = scmp.ne.s32.totalorder %s262, %s263
      %p272 = scmp.eq.s32.totalorder %s28, 0
      %p273 = por %p271, %p272
      %p274 = scmp.ne.s32.totalorder %s262, %s263
      %p275 = scmp.eq.s32.totalorder %s29, 7
      %p276 = por %p274, %p275
      %p278 = scmp.ne.s32.totalorder %s263, %s277
      %p279 = scmp.eq.s32.totalorder %s29, 0
      %p280 = por %p278, %p279
      %s282 = sadd.s32 %s281, 1
      %p285 = scmp.eq.s32.totalorder %s23, 7
      %p286 = scmp.ne.s32.totalorder %s281, %s283
      %p287 = scmp.eq.s32.totalorder %s23, 0
      %p288 = por %p286, %p287
      %p289 = scmp.ne.s32.totalorder %s281, %s283
      %p290 = scmp.eq.s32.totalorder %s28, 7
      %p291 = por %p289, %p290
      %p292 = scmp.ne.s32.totalorder %s283, %s284
      %p293 = scmp.eq.s32.totalorder %s28, 0
      %p294 = por %p292, %p293
      %p295 = scmp.ne.s32.totalorder %s283, %s284
      %p296 = scmp.eq.s32.totalorder %s29, 7
      %p297 = por %p295, %p296
      %p299 = scmp.ne.s32.totalorder %s284, %s298
      %p300 = scmp.eq.s32.totalorder %s29, 0
      %p301 = por %p299, %p300
      %s302 = ssub.s32 %s30, %s49
      %s303 = ssub.s32 %s31, %s45
      %s304 = sor.u32 %s302, %s303
      %p305 = scmp.eq.s32.totalorder %s304, 0
      %s307 = sadd.s32 %s306, 1
      %s308 = scalar_select %p305, %s306, %s307
      %p311 = pneg %p305
      %p312 = scmp.eq.s32.totalorder %s23, 7
      %p313 = por %p311, %p312
      %p314 = scmp.ne.s32.totalorder %s306, %s309
      %p315 = scmp.eq.s32.totalorder %s23, 0
      %p316 = por %p314, %p315
      %p317 = scmp.ne.s32.totalorder %s306, %s309
      %p318 = scmp.eq.s32.totalorder %s28, 7
      %p319 = por %p317, %p318
      %p320 = scmp.ne.s32.totalorder %s309, %s310
      %p321 = scmp.eq.s32.totalorder %s28, 0
      %p322 = por %p320, %p321
      %p323 = scmp.ne.s32.totalorder %s309, %s310
      %p324 = scmp.eq.s32.totalorder %s29, 7
      %p325 = por %p323, %p324
      %p327 = scmp.ne.s32.totalorder %s310, %s326
      %p328 = scmp.eq.s32.totalorder %s29, 0
      %p329 = por %p327, %p328
      %p330 = scmp.le.s32.totalorder 1, %s23
      %p331 = scmp.lt.s32.totalorder %s23, 9
      %p332 = pnand %p330, %p331
      %p333 = pneg %p332
      // Predicated region
      $region9: #{tpu_custom_call.1} parent=5 // pred_check
        _
      $region10: #{tpu_custom_call.1} parent=5 // pred_check_branch
        %335 = sbr.rel (%p332) target = $region12
      $region11: #{tpu_custom_call.1} parent=5 // pred_region
        %s336 = ssub.s32 %s23, 1
        // Predicated region
        $region13: #{tpu_custom_call.1} parent=11 // pred_check
          %p337 = pneg %p147
        $region14: #{tpu_custom_call.1} parent=11 // pred_check_branch
          %339 = sbr.rel (%p337) target = $region16
        $region15: #{tpu_custom_call.1} parent=11 // pred_region
          _
        $region16: #{tpu_custom_call.1} parent=11 // pred_fallthru
          _
        // Predicated region
        $region17: #{tpu_custom_call.1} parent=11 // pred_check
          %p340 = pneg %p168
        $region18: #{tpu_custom_call.1} parent=11 // pred_check_branch
          %342 = sbr.rel (%p340) target = $region20
        $region19: #{tpu_custom_call.1} parent=11 // pred_region
          _
        $region20: #{tpu_custom_call.1} parent=11 // pred_fallthru
          _
        // Predicated region
        $region21: #{tpu_custom_call.1} parent=11 // pred_check
          %p343 = pneg %p189
        $region22: #{tpu_custom_call.1} parent=11 // pred_check_branch
          %345 = sbr.rel (%p343) target = $region24
        $region23: #{tpu_custom_call.1} parent=11 // pred_region
          _
        $region24: #{tpu_custom_call.1} parent=11 // pred_fallthru
          _
        // Predicated region
        $region25: #{tpu_custom_call.1} parent=11 // pred_check
          %p346 = pneg %p210
        $region26: #{tpu_custom_call.1} parent=11 // pred_check_branch
          %348 = sbr.rel (%p346) target = $region28
        $region27: #{tpu_custom_call.1} parent=11 // pred_region
          _
        $region28: #{tpu_custom_call.1} parent=11 // pred_fallthru
          _
        // Predicated region
        $region29: #{tpu_custom_call.1} parent=11 // pred_check
          %p349 = pneg %p231
        $region30: #{tpu_custom_call.1} parent=11 // pred_check_branch
          %351 = sbr.rel (%p349) target = $region32
        $region31: #{tpu_custom_call.1} parent=11 // pred_region
          _
        $region32: #{tpu_custom_call.1} parent=11 // pred_fallthru
          _
        // Predicated region
        $region33: #{tpu_custom_call.1} parent=11 // pred_check
          %p352 = pneg %p252
        $region34: #{tpu_custom_call.1} parent=11 // pred_check_branch
          %354 = sbr.rel (%p352) target = $region36
        $region35: #{tpu_custom_call.1} parent=11 // pred_region
          _
        $region36: #{tpu_custom_call.1} parent=11 // pred_fallthru
          _
        // Predicated region
        $region37: #{tpu_custom_call.1} parent=11 // pred_check
          %p355 = pneg %p273
        $region38: #{tpu_custom_call.1} parent=11 // pred_check_branch
          %357 = sbr.rel (%p355) target = $region40
        $region39: #{tpu_custom_call.1} parent=11 // pred_region
          _
        $region40: #{tpu_custom_call.1} parent=11 // pred_fallthru
          _
        // Predicated region
        $region41: #{tpu_custom_call.1} parent=11 // pred_check
          %p358 = pneg %p294
        $region42: #{tpu_custom_call.1} parent=11 // pred_check_branch
          %360 = sbr.rel (%p358) target = $region44
        $region43: #{tpu_custom_call.1} parent=11 // pred_region
          _
        $region44: #{tpu_custom_call.1} parent=11 // pred_fallthru
          _
      $region12: #{tpu_custom_call.1} parent=5 // pred_fallthru
        _
      %p361 = scmp.lt.s32.totalorder %s23, 8
      // Predicated region
      $region45: #{tpu_custom_call.1} parent=5 // pred_check
        %p362 = pneg %p361
      $region46: #{tpu_custom_call.1} parent=5 // pred_check_branch
        %364 = sbr.rel (%p362) target = $region48
      $region47: #{tpu_custom_call.1} parent=5 // pred_region
        // Predicated region
        $region49: #{tpu_custom_call.1} parent=47 // pred_check
          %p365 = pneg %p64
        $region50: #{tpu_custom_call.1} parent=47 // pred_check_branch
          %367 = sbr.rel (%p365) target = $region52
        $region51: #{tpu_custom_call.1} parent=47 // pred_region
          %p368 = scmp.lt.s32.totalorder %s30, 1
          %s369 = scalar_select %p368, %s30, 1
          %p370 = scmp.lt.s32.totalorder %s31, 1
          %s371 = scalar_select %p370, %s31, 1
          %s372 = smul.addr %s369, 2
          %s373 = sadd.s32 %s371, %s372
          %s374 = smul.addr %s373, 4
          %s375 = scalar_lea.vmem %s0, %s374
        $region52: #{tpu_custom_call.1} parent=47 // pred_fallthru
          _
        // Predicated region
        $region53: #{tpu_custom_call.1} parent=47 // pred_check
          %p376 = pneg %p92
        $region54: #{tpu_custom_call.1} parent=47 // pred_check_branch
          %378 = sbr.rel (%p376) target = $region56
        $region55: #{tpu_custom_call.1} parent=47 // pred_region
          %p379 = scmp.lt.s32.totalorder %s30, 1
          %s380 = scalar_select %p379, %s30, 1
          %p381 = scmp.lt.s32.totalorder %s32, 1
          %s382 = scalar_select %p381, %s32, 1
          %s383 = smul.addr %s380, 2
          %s384 = sadd.s32 %s382, %s383
          %s385 = smul.addr %s384, 4
          %s386 = scalar_lea.vmem %s1, %s385
        $region56: #{tpu_custom_call.1} parent=47 // pred_fallthru
          _
        // Predicated region
        $region57: #{tpu_custom_call.1} parent=47 // pred_check
          %p387 = pneg %p120
        $region58: #{tpu_custom_call.1} parent=47 // pred_check_branch
          %389 = sbr.rel (%p387) target = $region60
        $region59: #{tpu_custom_call.1} parent=47 // pred_region
          %s390 = sand.u32 %s110, 1
          %s391 = scalar_lea.sflag [#allocation6], %s390
          %s392 = sand.u32 %s110, 1
          %s393 = smul.addr %s392, 4
          %s394 = scalar_lea.vmem [#allocation5], %s393
          %396 = vsyncadd %s391, 0
          %s397 = smul.addr %s30, 2
          %s398 = sadd.s32 %s32, %s397
          %s399 = smul.addr %s398, 4
          %s400 = scalar_lea.hbm %s2, %s399
          %s402 = sshll.u32 %s400, 4
          %s403 = int_to_ptr.hbm [resolvable:$true] %s402
          %s404 = sshll.u32 %s394, 4
          %s405 = int_to_ptr.vmem [resolvable:$true] %s404
          %407 = dma.hbm_to_vmem [thread:$0]  %s403, 64, %s405, %s391
        $region60: #{tpu_custom_call.1} parent=47 // pred_fallthru
          _
      $region48: #{tpu_custom_call.1} parent=5 // pred_fallthru
        _
      %p408 = scmp.le.s32.totalorder 1, %s23
      %p409 = scmp.lt.s32.totalorder %s23, 9
      %p410 = pnand %p408, %p409
      %p411 = pneg %p410
      // Predicated region
      $region61: #{tpu_custom_call.1} parent=5 // pred_check
        _
      $region62: #{tpu_custom_call.1} parent=5 // pred_check_branch
        %413 = sbr.rel (%p410) target = $region64
      $region63: #{tpu_custom_call.1} parent=5 // pred_region
        %s414 = ssub.s32 %s23, 1
        %s415 = sand.u32 %s113, 1
        %s416 = scalar_lea.sflag [#allocation6], %s415
        %s417 = sand.u32 %s113, 1
        %s418 = smul.addr %s417, 4
        %s419 = scalar_lea.vmem [#allocation5], %s418
        // Predicated region
        $region65: #{tpu_custom_call.1} parent=63 // pred_check
          %p420 = pneg %p126
        $region66: #{tpu_custom_call.1} parent=63 // pred_check_branch
          %422 = sbr.rel (%p420) target = $region68
        $region67: #{tpu_custom_call.1} parent=63 // pred_region
          %424 = dma.done %s416, 64
        $region68: #{tpu_custom_call.1} parent=63 // pred_fallthru
          _
        %p425 = scmp.lt.s32.totalorder %s33, 1
        %s426 = scalar_select %p425, %s33, 1
        %p427 = scmp.lt.s32.totalorder %s34, 1
        %s428 = scalar_select %p427, %s34, 1
        %s429 = smul.addr %s426, 2
        %s430 = sadd.s32 %s428, %s429
        %s431 = smul.addr %s430, 4
        %s432 = scalar_lea.vmem %s0, %s431
        %p433 = pneg %p70
        %p434 = pneg %p67
        %p435 = scmp.lt.s32.totalorder %s33, 1
        %s436 = scalar_select %p435, %s33, 1
        %p437 = scmp.lt.s32.totalorder %s35, 1
        %s438 = scalar_select %p437, %s35, 1
        %s439 = smul.addr %s436, 2
        %s440 = sadd.s32 %s438, %s439
        %s441 = smul.addr %s440, 4
        %s442 = scalar_lea.vmem %s1, %s441
        %p443 = pneg %p98
        %p444 = pneg %p95
        %s445 = sand.u32 %s113, 1
        %s446 = scalar_lea.sflag [#allocation6], %s445
        %s447 = sand.u32 %s113, 1
        %s448 = smul.addr %s447, 4
        %s449 = scalar_lea.vmem [#allocation5], %s448
        %p450 = pneg %p126
        %p451 = pneg %p123
        %p452 = pneg %p147
        %p453 = pneg %p144
        %p454 = pneg %p168
        %p455 = pneg %p165
        %p456 = pneg %p189
        %p457 = pneg %p186
        %p458 = pneg %p210
        %p459 = pneg %p207
        %p460 = pneg %p231
        %p461 = pneg %p228
        %p462 = pneg %p252
        %p463 = pneg %p249
        %p464 = pneg %p273
        %p465 = pneg %p270
        %p466 = pneg %p294
        %p467 = pneg %p291
        %p468 = pneg %p322
        %p469 = pneg %p319
        %s470 = sand.u32 %s309, 1
        %s471 = scalar_lea.sflag [#allocation7], %s470
        %s472 = sand.u32 %s309, 1
        %s473 = smul.addr %s472, 4
        %s474 = scalar_lea.vmem [#allocation8], %s473
        %p475 = scmp.lt.s32.totalorder %s33, 1
        %s476 = scalar_select %p475, %s33, 1
        %p477 = scmp.lt.s32.totalorder %s34, 1
        %s478 = scalar_select %p477, %s34, 1
        %s479 = smul.addr %s476, 2
        %s480 = sadd.s32 %s478, %s479
        %s481 = smul.addr %s480, 4
        %s482 = scalar_lea.vmem %s0, %s481
        %p483 = scmp.lt.s32.totalorder %s33, 1
        %s484 = scalar_select %p483, %s33, 1
        %p485 = scmp.lt.s32.totalorder %s35, 1
        %s486 = scalar_select %p485, %s35, 1
        %s487 = smul.addr %s484, 2
        %s488 = sadd.s32 %s486, %s487
        %s489 = smul.addr %s488, 4
        %s490 = scalar_lea.vmem %s1, %s489
        %p492 = scmp.eq.s32.totalorder %s35, 0
        // Predicated region
        $region69: #{tpu_custom_call.1} parent=63 // pred_check
          %p493 = pneg %p492
        $region70: #{tpu_custom_call.1} parent=63 // pred_check_branch
          %495 = sbr.rel (%p493) target = $region72
        $region71: #{tpu_custom_call.1} parent=63 // pred_region
          %vm496 = vcmask 7168
          %497 = vst.msk [vmem:[#allocation2] sm:$0xff] %vm496, -inf
          %498 = vst.msk [vmem:[#allocation2 + $0x8] sm:$0xff] %vm496, -inf
          %499 = vst.msk [vmem:[#allocation2 + $0x10] sm:$0xff] %vm496, -inf
          %500 = vst.msk [vmem:[#allocation2 + $0x18] sm:$0xff] %vm496, -inf
          %501 = vst.msk [vmem:[#allocation2 + $0x20] sm:$0xff] %vm496, -inf
          %502 = vst.msk [vmem:[#allocation2 + $0x28] sm:$0xff] %vm496, -inf
          %503 = vst.msk [vmem:[#allocation2 + $0x30] sm:$0xff] %vm496, -inf
          %504 = vst.msk [vmem:[#allocation2 + $0x38] sm:$0xff] %vm496, -inf
          %505 = vst.msk [vmem:[#allocation2 + $0x40] sm:$0xff] %vm496, -inf
          %506 = vst.msk [vmem:[#allocation2 + $0x48] sm:$0xff] %vm496, -inf
          %507 = vst.msk [vmem:[#allocation2 + $0x50] sm:$0xff] %vm496, -inf
          %508 = vst.msk [vmem:[#allocation2 + $0x58] sm:$0xff] %vm496, -inf
          %509 = vst.msk [vmem:[#allocation2 + $0x60] sm:$0xff] %vm496, -inf
          %510 = vst.msk [vmem:[#allocation2 + $0x68] sm:$0xff] %vm496, -inf
          %511 = vst.msk [vmem:[#allocation2 + $0x70] sm:$0xff] %vm496, -inf
          %512 = vst.msk [vmem:[#allocation2 + $0x78] sm:$0xff] %vm496, -inf
          %513 = vst.msk [vmem:[#allocation3] sm:$0xff] %vm496, 0.0
          %514 = vst.msk [vmem:[#allocation3 + $0x8] sm:$0xff] %vm496, 0.0
          %515 = vst.msk [vmem:[#allocation3 + $0x10] sm:$0xff] %vm496, 0.0
          %516 = vst.msk [vmem:[#allocation3 + $0x18] sm:$0xff] %vm496, 0.0
          %517 = vst.msk [vmem:[#allocation3 + $0x20] sm:$0xff] %vm496, 0.0
          %518 = vst.msk [vmem:[#allocation3 + $0x28] sm:$0xff] %vm496, 0.0
          %519 = vst.msk [vmem:[#allocation3 + $0x30] sm:$0xff] %vm496, 0.0
          %520 = vst.msk [vmem:[#allocation3 + $0x38] sm:$0xff] %vm496, 0.0
          %521 = vst.msk [vmem:[#allocation3 + $0x40] sm:$0xff] %vm496, 0.0
          %522 = vst.msk [vmem:[#allocation3 + $0x48] sm:$0xff] %vm496, 0.0
          %523 = vst.msk [vmem:[#allocation3 + $0x50] sm:$0xff] %vm496, 0.0
          %524 = vst.msk [vmem:[#allocation3 + $0x58] sm:$0xff] %vm496, 0.0
          %525 = vst.msk [vmem:[#allocation3 + $0x60] sm:$0xff] %vm496, 0.0
          %526 = vst.msk [vmem:[#allocation3 + $0x68] sm:$0xff] %vm496, 0.0
          %527 = vst.msk [vmem:[#allocation3 + $0x70] sm:$0xff] %vm496, 0.0
          %528 = vst.msk [vmem:[#allocation3 + $0x78] sm:$0xff] %vm496, 0.0
          %vm529 = vcmask 64512
          %530 = vst.msk [vmem:[#allocation4] sm:$0xff] %vm529, 0.0
          %531 = vst.msk [vmem:[#allocation4 + $0x8] sm:$0xff] %vm529, 0.0
          %532 = vst.msk [vmem:[#allocation4 + $0x10] sm:$0xff] %vm529, 0.0
          %533 = vst.msk [vmem:[#allocation4 + $0x18] sm:$0xff] %vm529, 0.0
          %534 = vst.msk [vmem:[#allocation4 + $0x20] sm:$0xff] %vm529, 0.0
          %535 = vst.msk [vmem:[#allocation4 + $0x28] sm:$0xff] %vm529, 0.0
          %536 = vst.msk [vmem:[#allocation4 + $0x30] sm:$0xff] %vm529, 0.0
          %537 = vst.msk [vmem:[#allocation4 + $0x38] sm:$0xff] %vm529, 0.0
          %538 = vst.msk [vmem:[#allocation4 + $0x40] sm:$0xff] %vm529, 0.0
          %539 = vst.msk [vmem:[#allocation4 + $0x48] sm:$0xff] %vm529, 0.0
          %540 = vst.msk [vmem:[#allocation4 + $0x50] sm:$0xff] %vm529, 0.0
          %541 = vst.msk [vmem:[#allocation4 + $0x58] sm:$0xff] %vm529, 0.0
          %542 = vst.msk [vmem:[#allocation4 + $0x60] sm:$0xff] %vm529, 0.0
          %543 = vst.msk [vmem:[#allocation4 + $0x68] sm:$0xff] %vm529, 0.0
          %544 = vst.msk [vmem:[#allocation4 + $0x70] sm:$0xff] %vm529, 0.0
          %545 = vst.msk [vmem:[#allocation4 + $0x78] sm:$0xff] %vm529, 0.0
        $region72: #{tpu_custom_call.1} parent=63 // pred_fallthru
          _
        %v546 = vld [vmem:[%s5] sm:$0xff]
        %v547 = vld [vmem:[%s482] sm:$0xf]
        %v548 = vld [vmem:[%s6] sm:$0xff]
        %550 = vset.pattern.permute.xlu0 0
        %551 = vperm.xlu0 %550, %v548
        %v552 = vpop.permute.xlu0 %551
        %vm554 = vcmask 31744
        %v556 = vsel %vm554, %v546, 0
        %vm558 = vcmask 1043456
        %v560 = vsel %vm558, %v547, 0
        %562 = vmatpush.msra.mxu0 0.0
        %563 = vmatpush.msra.mxu0 0.0
        %564 = vmatpush.msra.mxu0 0.0
        %565 = vmatpush.msra.mxu0 0.0
        %566 = vmatpush.msra.mxu0 0.0
        %567 = vmatpush.msra.mxu0 0.0
        %568 = vmatpush.msra.mxu0 0.0
        %569 = vmatpush.msra.mxu0 0.0
        %570 = vmatpush.msra.mxu0 0.0
        %571 = vmatpush.msra.mxu0 0.0
        %572 = vmatpush.msra.mxu0 0.0
        %573 = vmatpush.msra.mxu0 0.0
        %574 = vmatpush.msra.mxu0 0.0
        %575 = vmatpush.msra.mxu0 0.0
        %576 = vmatpush.msra.mxu0 0.0
        %577 = vmatpush.msra.mxu0 %v560
        %578 = vmatmul.f32.gmra.mxu0 %v556
        %v579 = vpop.f32.mrf.mxu0
        %v580 = vadd.f32 %v552, %v579
        %581 = vdwg.mxu0
        %v582 = vld [vmem:[%s3] sm:$0xff]
        %v583 = vld [vmem:[%s490] sm:$0xf]
        %v584 = vld [vmem:[%s4] sm:$0xff]
        %586 = vset.pattern.permute.xlu0 0
        %587 = vperm.xlu0 %586, %v584
        %v588 = vpop.permute.xlu0 %587
        %v591 = vsel %vm554, %v582, 0
        %v594 = vsel %vm558, %v583, 0
        %596 = vmatpush.msra.mxu0 0.0
        %597 = vmatpush.msra.mxu0 0.0
        %598 = vmatpush.msra.mxu0 0.0
        %599 = vmatpush.msra.mxu0 0.0
        %600 = vmatpush.msra.mxu0 0.0
        %601 = vmatpush.msra.mxu0 0.0
        %602 = vmatpush.msra.mxu0 0.0
        %603 = vmatpush.msra.mxu0 0.0
        %604 = vmatpush.msra.mxu0 0.0
        %605 = vmatpush.msra.mxu0 0.0
        %606 = vmatpush.msra.mxu0 0.0
        %607 = vmatpush.msra.mxu0 0.0
        %608 = vmatpush.msra.mxu0 0.0
        %609 = vmatpush.msra.mxu0 0.0
        %610 = vmatpush.msra.mxu0 0.0
        %611 = vmatpush.msra.mxu0 %v594
        %612 = vmatmul.f32.gmra.mxu0 %v591
        %v613 = vpop.f32.mrf.mxu0
        %v614 = vadd.f32 %v588, %v613
        %615 = vdwg.mxu0
        %v616 = vld [vmem:[%s7] sm:$0xff]
        %v617 = vld [vmem:[%s419] sm:$0xf]
        %v618 = vld [vmem:[%s8] sm:$0xff]
        %620 = vset.pattern.permute.xlu0 0
        %621 = vperm.xlu0 %620, %v618
        %v622 = vpop.permute.xlu0 %621
        %v625 = vsel %vm554, %v616, 0
        %v628 = vsel %vm558, %v617, 0
        %630 = vmatpush.msra.mxu0 0.0
        %631 = vmatpush.msra.mxu0 0.0
        %632 = vmatpush.msra.mxu0 0.0
        %633 = vmatpush.msra.mxu0 0.0
        %634 = vmatpush.msra.mxu0 0.0
        %635 = vmatpush.msra.mxu0 0.0
        %636 = vmatpush.msra.mxu0 0.0
        %637 = vmatpush.msra.mxu0 0.0
        %638 = vmatpush.msra.mxu0 0.0
        %639 = vmatpush.msra.mxu0 0.0
        %640 = vmatpush.msra.mxu0 0.0
        %641 = vmatpush.msra.mxu0 0.0
        %642 = vmatpush.msra.mxu0 0.0
        %643 = vmatpush.msra.mxu0 0.0
        %644 = vmatpush.msra.mxu0 0.0
        %645 = vmatpush.msra.mxu0 %v628
        %646 = vmatmul.f32.gmra.mxu0 %v625
        %v647 = vpop.f32.mrf.mxu0
        %v648 = vadd.f32 %v622, %v647
        %649 = vdwg.mxu0
        %650 = vxpose.xlu0.b32.start [1/16] %v580, 128
        %651 = vxpose.xlu0.b32.cont [2/16] 0.0, 128
        %652 = vxpose.xlu0.b32.cont [3/16] 0.0, 128
        %653 = vxpose.xlu0.b32.cont [4/16] 0.0, 128
        %654 = vxpose.xlu0.b32.cont [5/16] 0.0, 128
        %655 = vxpose.xlu0.b32.cont [6/16] 0.0, 128
        %656 = vxpose.xlu0.b32.cont [7/16] 0.0, 128
        %657 = vxpose.xlu0.b32.cont [8/16] 0.0, 128
        %658 = vxpose.xlu0.b32.cont [9/16] 0.0, 128
        %659 = vxpose.xlu0.b32.cont [10/16] 0.0, 128
        %660 = vxpose.xlu0.b32.cont [11/16] 0.0, 128
        %661 = vxpose.xlu0.b32.cont [12/16] 0.0, 128
        %662 = vxpose.xlu0.b32.cont [13/16] 0.0, 128
        %663 = vxpose.xlu0.b32.cont [14/16] 0.0, 128
        %664 = vxpose.xlu0.b32.cont [15/16] 0.0, 128
        %665 = vxpose.xlu0.b32.end [16/16] 0.0, 128
        %v666 = vpop.trf.xlu0
        %v667 = vpop.trf.xlu0
        %v668 = vpop.trf.xlu0
        %v669 = vpop.trf.xlu0
        %v670 = vpop.trf.xlu0
        %v671 = vpop.trf.xlu0
        %v672 = vpop.trf.xlu0
        %v673 = vpop.trf.xlu0
        %v674 = vpop.trf.xlu0
        %v675 = vpop.trf.xlu0
        %v676 = vpop.trf.xlu0
        %v677 = vpop.trf.xlu0
        %v678 = vpop.trf.xlu0
        %v679 = vpop.trf.xlu0
        %v680 = vpop.trf.xlu0
        %v681 = vpop.trf.xlu0
        %v682 = vpack.c.bf16 %v667, %v666
        %v683 = vpack.c.bf16 %v669, %v668
        %v684 = vpack.c.bf16 %v671, %v670
        %v685 = vpack.c.bf16 %v673, %v672
        %v686 = vpack.c.bf16 %v675, %v674
        %v687 = vpack.c.bf16 %v677, %v676
        %v688 = vpack.c.bf16 %v679, %v678
        %v689 = vpack.c.bf16 %v681, %v680
        %v690 = vpack.c.bf16 %v648, %v648
        %vm691 = vcmask 64512
        %v693 = vsel %vm691, %v682, 0
        %v696 = vsel %vm691, %v683, 0
        %v699 = vsel %vm691, %v684, 0
        %v702 = vsel %vm691, %v685, 0
        %v705 = vsel %vm691, %v686, 0
        %v708 = vsel %vm691, %v687, 0
        %v711 = vsel %vm691, %v688, 0
        %v714 = vsel %vm691, %v689, 0
        %v717 = vsel %vm558, %v690, 0
        %719 = vmatpush.bf16.msra.mxu0 0
        %720 = vmatpush.bf16.msra.mxu0 0
        %721 = vmatpush.bf16.msra.mxu0 0
        %722 = vmatpush.bf16.msra.mxu0 0
        %723 = vmatpush.bf16.msra.mxu0 0
        %724 = vmatpush.bf16.msra.mxu0 0
        %725 = vmatpush.bf16.msra.mxu0 0
        %726 = vmatpush.bf16.msra.mxu0 %v717
        %727 = vmatmul.bf16.gmra.mxu0 %v693
        %v728 = vpop.f32.mrf.mxu0
        %v729 = vadd.f32 0.0, %v728
        %v730 = vpop.f32.mrf.mxu0
        %v731 = vadd.f32 0.0, %v730
        %732 = vmatmul.bf16.gmra.mxu0 %v696
        %v733 = vpop.f32.mrf.mxu0
        %v734 = vadd.f32 0.0, %v733
        %v735 = vpop.f32.mrf.mxu0
        %v736 = vadd.f32 0.0, %v735
        %737 = vmatmul.bf16.gmra.mxu0 %v699
        %v738 = vpop.f32.mrf.mxu0
        %v739 = vadd.f32 0.0, %v738
        %v740 = vpop.f32.mrf.mxu0
        %v741 = vadd.f32 0.0, %v740
        %742 = vmatmul.bf16.gmra.mxu0 %v702
        %v743 = vpop.f32.mrf.mxu0
        %v744 = vadd.f32 0.0, %v743
        %v745 = vpop.f32.mrf.mxu0
        %v746 = vadd.f32 0.0, %v745
        %747 = vmatmul.bf16.gmra.mxu0 %v705
        %v748 = vpop.f32.mrf.mxu0
        %v749 = vadd.f32 0.0, %v748
        %v750 = vpop.f32.mrf.mxu0
        %v751 = vadd.f32 0.0, %v750
        %752 = vmatmul.bf16.gmra.mxu0 %v708
        %v753 = vpop.f32.mrf.mxu0
        %v754 = vadd.f32 0.0, %v753
        %v755 = vpop.f32.mrf.mxu0
        %v756 = vadd.f32 0.0, %v755
        %757 = vmatmul.bf16.gmra.mxu0 %v711
        %v758 = vpop.f32.mrf.mxu0
        %v759 = vadd.f32 0.0, %v758
        %v760 = vpop.f32.mrf.mxu0
        %v761 = vadd.f32 0.0, %v760
        %762 = vmatmul.bf16.gmra.mxu0 %v714
        %v763 = vpop.f32.mrf.mxu0
        %v764 = vadd.f32 0.0, %v763
        %v765 = vpop.f32.mrf.mxu0
        %v766 = vadd.f32 0.0, %v765
        %767 = vdwg.mxu0
        %v768 = vld [vmem:[#allocation2] sm:$0xff]
        %v769 = vld [vmem:[#allocation2 + $0x8] sm:$0xff]
        %v770 = vld [vmem:[#allocation2 + $0x10] sm:$0xff]
        %v771 = vld [vmem:[#allocation2 + $0x18] sm:$0xff]
        %v772 = vld [vmem:[#allocation2 + $0x20] sm:$0xff]
        %v773 = vld [vmem:[#allocation2 + $0x28] sm:$0xff]
        %v774 = vld [vmem:[#allocation2 + $0x30] sm:$0xff]
        %v775 = vld [vmem:[#allocation2 + $0x38] sm:$0xff]
        %v776 = vld [vmem:[#allocation2 + $0x40] sm:$0xff]
        %v777 = vld [vmem:[#allocation2 + $0x48] sm:$0xff]
        %v778 = vld [vmem:[#allocation2 + $0x50] sm:$0xff]
        %v779 = vld [vmem:[#allocation2 + $0x58] sm:$0xff]
        %v780 = vld [vmem:[#allocation2 + $0x60] sm:$0xff]
        %v781 = vld [vmem:[#allocation2 + $0x68] sm:$0xff]
        %v782 = vld [vmem:[#allocation2 + $0x70] sm:$0xff]
        %v783 = vld [vmem:[#allocation2 + $0x78] sm:$0xff]
        %784 = vmax.xlane.f32.xlu0 %v729
        %v785 = vpop.xlane.xlu0 %784
        %786 = vmax.xlane.f32.xlu0 %v731
        %v787 = vpop.xlane.xlu0 %786
        %788 = vmax.xlane.f32.xlu0 %v734
        %v789 = vpop.xlane.xlu0 %788
        %790 = vmax.xlane.f32.xlu0 %v736
        %v791 = vpop.xlane.xlu0 %790
        %792 = vmax.xlane.f32.xlu0 %v739
        %v793 = vpop.xlane.xlu0 %792
        %794 = vmax.xlane.f32.xlu0 %v741
        %v795 = vpop.xlane.xlu0 %794
        %796 = vmax.xlane.f32.xlu0 %v744
        %v797 = vpop.xlane.xlu0 %796
        %798 = vmax.xlane.f32.xlu0 %v746
        %v799 = vpop.xlane.xlu0 %798
        %800 = vmax.xlane.f32.xlu0 %v749
        %v801 = vpop.xlane.xlu0 %800
        %802 = vmax.xlane.f32.xlu0 %v751
        %v803 = vpop.xlane.xlu0 %802
        %804 = vmax.xlane.f32.xlu0 %v754
        %v805 = vpop.xlane.xlu0 %804
        %806 = vmax.xlane.f32.xlu0 %v756
        %v807 = vpop.xlane.xlu0 %806
        %808 = vmax.xlane.f32.xlu0 %v759
        %v809 = vpop.xlane.xlu0 %808
        %810 = vmax.xlane.f32.xlu0 %v761
        %v811 = vpop.xlane.xlu0 %810
        %812 = vmax.xlane.f32.xlu0 %v764
        %v813 = vpop.xlane.xlu0 %812
        %814 = vmax.xlane.f32.xlu0 %v766
        %v815 = vpop.xlane.xlu0 %814
        %v816 = vmax.f32 %v768, %v785
        %v817 = vmax.f32 %v769, %v787
        %v818 = vmax.f32 %v770, %v789
        %v819 = vmax.f32 %v771, %v791
        %v820 = vmax.f32 %v772, %v793
        %v821 = vmax.f32 %v773, %v795
        %v822 = vmax.f32 %v774, %v797
        %v823 = vmax.f32 %v775, %v799
        %v824 = vmax.f32 %v776, %v801
        %v825 = vmax.f32 %v777, %v803
        %v826 = vmax.f32 %v778, %v805
        %v827 = vmax.f32 %v779, %v807
        %v828 = vmax.f32 %v780, %v809
        %v829 = vmax.f32 %v781, %v811
        %v830 = vmax.f32 %v782, %v813
        %v831 = vmax.f32 %v783, %v815
        %v832 = vsub.f32 %v768, %v816
        %v833 = vsub.f32 %v769, %v817
        %v834 = vsub.f32 %v770, %v818
        %v835 = vsub.f32 %v771, %v819
        %v836 = vsub.f32 %v772, %v820
        %v837 = vsub.f32 %v773, %v821
        %v838 = vsub.f32 %v774, %v822
        %v839 = vsub.f32 %v775, %v823
        %v840 = vsub.f32 %v776, %v824
        %v841 = vsub.f32 %v777, %v825
        %v842 = vsub.f32 %v778, %v826
        %v843 = vsub.f32 %v779, %v827
        %v844 = vsub.f32 %v780, %v828
        %v845 = vsub.f32 %v781, %v829
        %v846 = vsub.f32 %v782, %v830
        %v847 = vsub.f32 %v783, %v831
        %v848 = vmul.f32 %v832, 1.442695
        %v849 = vpow.pop %v848
        %v850 = vmul.f32 %v833, 1.442695
        %v851 = vpow.pop %v850
        %v852 = vmul.f32 %v834, 1.442695
        %v853 = vpow.pop %v852
        %v854 = vmul.f32 %v835, 1.442695
        %v855 = vpow.pop %v854
        %v856 = vmul.f32 %v836, 1.442695
        %v857 = vpow.pop %v856
        %v858 = vmul.f32 %v837, 1.442695
        %v859 = vpow.pop %v858
        %v860 = vmul.f32 %v838, 1.442695
        %v861 = vpow.pop %v860
        %v862 = vmul.f32 %v839, 1.442695
        %v863 = vpow.pop %v862
        %v864 = vmul.f32 %v840, 1.442695
        %v865 = vpow.pop %v864
        %v866 = vmul.f32 %v841, 1.442695
        %v867 = vpow.pop %v866
        %v868 = vmul.f32 %v842, 1.442695
        %v869 = vpow.pop %v868
        %v870 = vmul.f32 %v843, 1.442695
        %v871 = vpow.pop %v870
        %v872 = vmul.f32 %v844, 1.442695
        %v873 = vpow.pop %v872
        %v874 = vmul.f32 %v845, 1.442695
        %v875 = vpow.pop %v874
        %v876 = vmul.f32 %v846, 1.442695
        %v877 = vpow.pop %v876
        %v878 = vmul.f32 %v847, 1.442695
        %v879 = vpow.pop %v878
        %881 = vset.pattern.permute.xlu0 0
        %882 = vperm.xlu0 %881, %v816
        %v883 = vpop.permute.xlu0 %882
        %886 = vset.pattern.permute.xlu0 0
        %887 = vperm.xlu0 %886, %v817
        %v888 = vpop.permute.xlu0 %887
        %891 = vset.pattern.permute.xlu0 0
        %892 = vperm.xlu0 %891, %v818
        %v893 = vpop.permute.xlu0 %892
        %896 = vset.pattern.permute.xlu0 0
        %897 = vperm.xlu0 %896, %v819
        %v898 = vpop.permute.xlu0 %897
        %901 = vset.pattern.permute.xlu0 0
        %902 = vperm.xlu0 %901, %v820
        %v903 = vpop.permute.xlu0 %902
        %906 = vset.pattern.permute.xlu0 0
        %907 = vperm.xlu0 %906, %v821
        %v908 = vpop.permute.xlu0 %907
        %911 = vset.pattern.permute.xlu0 0
        %912 = vperm.xlu0 %911, %v822
        %v913 = vpop.permute.xlu0 %912
        %916 = vset.pattern.permute.xlu0 0
        %917 = vperm.xlu0 %916, %v823
        %v918 = vpop.permute.xlu0 %917
        %921 = vset.pattern.permute.xlu0 0
        %922 = vperm.xlu0 %921, %v824
        %v923 = vpop.permute.xlu0 %922
        %926 = vset.pattern.permute.xlu0 0
        %927 = vperm.xlu0 %926, %v825
        %v928 = vpop.permute.xlu0 %927
        %931 = vset.pattern.permute.xlu0 0
        %932 = vperm.xlu0 %931, %v826
        %v933 = vpop.permute.xlu0 %932
        %936 = vset.pattern.permute.xlu0 0
        %937 = vperm.xlu0 %936, %v827
        %v938 = vpop.permute.xlu0 %937
        %941 = vset.pattern.permute.xlu0 0
        %942 = vperm.xlu0 %941, %v828
        %v943 = vpop.permute.xlu0 %942
        %946 = vset.pattern.permute.xlu0 0
        %947 = vperm.xlu0 %946, %v829
        %v948 = vpop.permute.xlu0 %947
        %951 = vset.pattern.permute.xlu0 0
        %952 = vperm.xlu0 %951, %v830
        %v953 = vpop.permute.xlu0 %952
        %956 = vset.pattern.permute.xlu0 0
        %957 = vperm.xlu0 %956, %v831
        %v958 = vpop.permute.xlu0 %957
        %v960 = vsub.f32 %v729, %v883
        %v961 = vsub.f32 %v731, %v888
        %v962 = vsub.f32 %v734, %v893
        %v963 = vsub.f32 %v736, %v898
        %v964 = vsub.f32 %v739, %v903
        %v965 = vsub.f32 %v741, %v908
        %v966 = vsub.f32 %v744, %v913
        %v967 = vsub.f32 %v746, %v918
        %v968 = vsub.f32 %v749, %v923
        %v969 = vsub.f32 %v751, %v928
        %v970 = vsub.f32 %v754, %v933
        %v971 = vsub.f32 %v756, %v938
        %v972 = vsub.f32 %v759, %v943
        %v973 = vsub.f32 %v761, %v948
        %v974 = vsub.f32 %v764, %v953
        %v975 = vsub.f32 %v766, %v958
        %v976 = vmul.f32 %v960, 1.442695
        %v977 = vpow.pop %v976
        %v978 = vmul.f32 %v961, 1.442695
        %v979 = vpow.pop %v978
        %v980 = vmul.f32 %v962, 1.442695
        %v981 = vpow.pop %v980
        %v982 = vmul.f32 %v963, 1.442695
        %v983 = vpow.pop %v982
        %v984 = vmul.f32 %v964, 1.442695
        %v985 = vpow.pop %v984
        %v986 = vmul.f32 %v965, 1.442695
        %v987 = vpow.pop %v986
        %v988 = vmul.f32 %v966, 1.442695
        %v989 = vpow.pop %v988
        %v990 = vmul.f32 %v967, 1.442695
        %v991 = vpow.pop %v990
        %v992 = vmul.f32 %v968, 1.442695
        %v993 = vpow.pop %v992
        %v994 = vmul.f32 %v969, 1.442695
        %v995 = vpow.pop %v994
        %v996 = vmul.f32 %v970, 1.442695
        %v997 = vpow.pop %v996
        %v998 = vmul.f32 %v971, 1.442695
        %v999 = vpow.pop %v998
        %v1000 = vmul.f32 %v972, 1.442695
        %v1001 = vpow.pop %v1000
        %v1002 = vmul.f32 %v973, 1.442695
        %v1003 = vpow.pop %v1002
        %v1004 = vmul.f32 %v974, 1.442695
        %v1005 = vpow.pop %v1004
        %v1006 = vmul.f32 %v975, 1.442695
        %v1007 = vpow.pop %v1006
        %v1008 = vld [vmem:[#allocation3] sm:$0xff]
        %v1009 = vld [vmem:[#allocation3 + $0x8] sm:$0xff]
        %v1010 = vld [vmem:[#allocation3 + $0x10] sm:$0xff]
        %v1011 = vld [vmem:[#allocation3 + $0x18] sm:$0xff]
        %v1012 = vld [vmem:[#allocation3 + $0x20] sm:$0xff]
        %v1013 = vld [vmem:[#allocation3 + $0x28] sm:$0xff]
        %v1014 = vld [vmem:[#allocation3 + $0x30] sm:$0xff]
        %v1015 = vld [vmem:[#allocation3 + $0x38] sm:$0xff]
        %v1016 = vld [vmem:[#allocation3 + $0x40] sm:$0xff]
        %v1017 = vld [vmem:[#allocation3 + $0x48] sm:$0xff]
        %v1018 = vld [vmem:[#allocation3 + $0x50] sm:$0xff]
        %v1019 = vld [vmem:[#allocation3 + $0x58] sm:$0xff]
        %v1020 = vld [vmem:[#allocation3 + $0x60] sm:$0xff]
        %v1021 = vld [vmem:[#allocation3 + $0x68] sm:$0xff]
        %v1022 = vld [vmem:[#allocation3 + $0x70] sm:$0xff]
        %v1023 = vld [vmem:[#allocation3 + $0x78] sm:$0xff]
        %v1024 = vmul.f32 %v849, %v1008
        %v1025 = vmul.f32 %v851, %v1009
        %v1026 = vmul.f32 %v853, %v1010
        %v1027 = vmul.f32 %v855, %v1011
        %v1028 = vmul.f32 %v857, %v1012
        %v1029 = vmul.f32 %v859, %v1013
        %v1030 = vmul.f32 %v861, %v1014
        %v1031 = vmul.f32 %v863, %v1015
        %v1032 = vmul.f32 %v865, %v1016
        %v1033 = vmul.f32 %v867, %v1017
        %v1034 = vmul.f32 %v869, %v1018
        %v1035 = vmul.f32 %v871, %v1019
        %v1036 = vmul.f32 %v873, %v1020
        %v1037 = vmul.f32 %v875, %v1021
        %v1038 = vmul.f32 %v877, %v1022
        %v1039 = vmul.f32 %v879, %v1023
        %1040 = vadd.xlane.f32.xlu0 %v977
        %v1041 = vpop.xlane.xlu0 %1040
        %1042 = vadd.xlane.f32.xlu0 %v979
        %v1043 = vpop.xlane.xlu0 %1042
        %1044 = vadd.xlane.f32.xlu0 %v981
        %v1045 = vpop.xlane.xlu0 %1044
        %1046 = vadd.xlane.f32.xlu0 %v983
        %v1047 = vpop.xlane.xlu0 %1046
        %1048 = vadd.xlane.f32.xlu0 %v985
        %v1049 = vpop.xlane.xlu0 %1048
        %1050 = vadd.xlane.f32.xlu0 %v987
        %v1051 = vpop.xlane.xlu0 %1050
        %1052 = vadd.xlane.f32.xlu0 %v989
        %v1053 = vpop.xlane.xlu0 %1052
        %1054 = vadd.xlane.f32.xlu0 %v991
        %v1055 = vpop.xlane.xlu0 %1054
        %1056 = vadd.xlane.f32.xlu0 %v993
        %v1057 = vpop.xlane.xlu0 %1056
        %1058 = vadd.xlane.f32.xlu0 %v995
        %v1059 = vpop.xlane.xlu0 %1058
        %1060 = vadd.xlane.f32.xlu0 %v997
        %v1061 = vpop.xlane.xlu0 %1060
        %1062 = vadd.xlane.f32.xlu0 %v999
        %v1063 = vpop.xlane.xlu0 %1062
        %1064 = vadd.xlane.f32.xlu0 %v1001
        %v1065 = vpop.xlane.xlu0 %1064
        %1066 = vadd.xlane.f32.xlu0 %v1003
        %v1067 = vpop.xlane.xlu0 %1066
        %1068 = vadd.xlane.f32.xlu0 %v1005
        %v1069 = vpop.xlane.xlu0 %1068
        %1070 = vadd.xlane.f32.xlu0 %v1007
        %v1071 = vpop.xlane.xlu0 %1070
        %v1072 = vadd.f32 %v1024, %v1041
        %v1073 = vadd.f32 %v1025, %v1043
        %v1074 = vadd.f32 %v1026, %v1045
        %v1075 = vadd.f32 %v1027, %v1047
        %v1076 = vadd.f32 %v1028, %v1049
        %v1077 = vadd.f32 %v1029, %v1051
        %v1078 = vadd.f32 %v1030, %v1053
        %v1079 = vadd.f32 %v1031, %v1055
        %v1080 = vadd.f32 %v1032, %v1057
        %v1081 = vadd.f32 %v1033, %v1059
        %v1082 = vadd.f32 %v1034, %v1061
        %v1083 = vadd.f32 %v1035, %v1063
        %v1084 = vadd.f32 %v1036, %v1065
        %v1085 = vadd.f32 %v1037, %v1067
        %v1086 = vadd.f32 %v1038, %v1069
        %v1087 = vadd.f32 %v1039, %v1071
        %vm1088 = vcmask 7168
        %1089 = vst.msk [vmem:[#allocation3] sm:$0xff] %vm1088, %v1072
        %1090 = vst.msk [vmem:[#allocation3 + $0x8] sm:$0xff] %vm1088, %v1073
        %1091 = vst.msk [vmem:[#allocation3 + $0x10] sm:$0xff] %vm1088, %v1074
        %1092 = vst.msk [vmem:[#allocation3 + $0x18] sm:$0xff] %vm1088, %v1075
        %1093 = vst.msk [vmem:[#allocation3 + $0x20] sm:$0xff] %vm1088, %v1076
        %1094 = vst.msk [vmem:[#allocation3 + $0x28] sm:$0xff] %vm1088, %v1077
        %1095 = vst.msk [vmem:[#allocation3 + $0x30] sm:$0xff] %vm1088, %v1078
        %1096 = vst.msk [vmem:[#allocation3 + $0x38] sm:$0xff] %vm1088, %v1079
        %1097 = vst.msk [vmem:[#allocation3 + $0x40] sm:$0xff] %vm1088, %v1080
        %1098 = vst.msk [vmem:[#allocation3 + $0x48] sm:$0xff] %vm1088, %v1081
        %1099 = vst.msk [vmem:[#allocation3 + $0x50] sm:$0xff] %vm1088, %v1082
        %1100 = vst.msk [vmem:[#allocation3 + $0x58] sm:$0xff] %vm1088, %v1083
        %1101 = vst.msk [vmem:[#allocation3 + $0x60] sm:$0xff] %vm1088, %v1084
        %1102 = vst.msk [vmem:[#allocation3 + $0x68] sm:$0xff] %vm1088, %v1085
        %1103 = vst.msk [vmem:[#allocation3 + $0x70] sm:$0xff] %vm1088, %v1086
        %1104 = vst.msk [vmem:[#allocation3 + $0x78] sm:$0xff] %vm1088, %v1087
        %v1105 = vpack.c.bf16 %v979, %v977
        %v1106 = vpack.c.bf16 %v983, %v981
        %v1107 = vpack.c.bf16 %v987, %v985
        %v1108 = vpack.c.bf16 %v991, %v989
        %v1109 = vpack.c.bf16 %v995, %v993
        %v1110 = vpack.c.bf16 %v999, %v997
        %v1111 = vpack.c.bf16 %v1003, %v1001
        %v1112 = vpack.c.bf16 %v1007, %v1005
        %v1113 = vpack.c.bf16 %v614, %v614
        %1114 = vmatpush.bf16.xpose.msra.mxu0 0
        %1115 = vmatpush.bf16.xpose.msra.mxu0 0
        %1116 = vmatpush.bf16.xpose.msra.mxu0 0
        %1117 = vmatpush.bf16.xpose.msra.mxu0 0
        %1118 = vmatpush.bf16.xpose.msra.mxu0 0
        %1119 = vmatpush.bf16.xpose.msra.mxu0 0
        %1120 = vmatpush.bf16.xpose.msra.mxu0 0
        %1121 = vmatpush.bf16.xpose.msra.mxu0 %v1113
        %1122 = vmatmul.bf16.gmra.mxu0 %v1105
        %v1123 = vpop.f32.mrf.mxu0
        %v1124 = vadd.f32 0.0, %v1123
        %v1125 = vpop.f32.mrf.mxu0
        %v1126 = vadd.f32 0.0, %v1125
        %1127 = vmatmul.bf16.gmra.mxu0 %v1106
        %v1128 = vpop.f32.mrf.mxu0
        %v1129 = vadd.f32 0.0, %v1128
        %v1130 = vpop.f32.mrf.mxu0
        %v1131 = vadd.f32 0.0, %v1130
        %1132 = vmatmul.bf16.gmra.mxu0 %v1107
        %v1133 = vpop.f32.mrf.mxu0
        %v1134 = vadd.f32 0.0, %v1133
        %v1135 = vpop.f32.mrf.mxu0
        %v1136 = vadd.f32 0.0, %v1135
        %1137 = vmatmul.bf16.gmra.mxu0 %v1108
        %v1138 = vpop.f32.mrf.mxu0
        %v1139 = vadd.f32 0.0, %v1138
        %v1140 = vpop.f32.mrf.mxu0
        %v1141 = vadd.f32 0.0, %v1140
        %1142 = vmatmul.bf16.gmra.mxu0 %v1109
        %v1143 = vpop.f32.mrf.mxu0
        %v1144 = vadd.f32 0.0, %v1143
        %v1145 = vpop.f32.mrf.mxu0
        %v1146 = vadd.f32 0.0, %v1145
        %1147 = vmatmul.bf16.gmra.mxu0 %v1110
        %v1148 = vpop.f32.mrf.mxu0
        %v1149 = vadd.f32 0.0, %v1148
        %v1150 = vpop.f32.mrf.mxu0
        %v1151 = vadd.f32 0.0, %v1150
        %1152 = vmatmul.bf16.gmra.mxu0 %v1111
        %v1153 = vpop.f32.mrf.mxu0
        %v1154 = vadd.f32 0.0, %v1153
        %v1155 = vpop.f32.mrf.mxu0
        %v1156 = vadd.f32 0.0, %v1155
        %1157 = vmatmul.bf16.gmra.mxu0 %v1112
        %v1158 = vpop.f32.mrf.mxu0
        %v1159 = vadd.f32 0.0, %v1158
        %v1160 = vpop.f32.mrf.mxu0
        %v1161 = vadd.f32 0.0, %v1160
        %1162 = vdwg.mxu0
        %v1163 = vld [vmem:[#allocation4] sm:$0xff]
        %v1164 = vld [vmem:[#allocation4 + $0x8] sm:$0xff]
        %v1165 = vld [vmem:[#allocation4 + $0x10] sm:$0xff]
        %v1166 = vld [vmem:[#allocation4 + $0x18] sm:$0xff]
        %v1167 = vld [vmem:[#allocation4 + $0x20] sm:$0xff]
        %v1168 = vld [vmem:[#allocation4 + $0x28] sm:$0xff]
        %v1169 = vld [vmem:[#allocation4 + $0x30] sm:$0xff]
        %v1170 = vld [vmem:[#allocation4 + $0x38] sm:$0xff]
        %v1171 = vld [vmem:[#allocation4 + $0x40] sm:$0xff]
        %v1172 = vld [vmem:[#allocation4 + $0x48] sm:$0xff]
        %v1173 = vld [vmem:[#allocation4 + $0x50] sm:$0xff]
        %v1174 = vld [vmem:[#allocation4 + $0x58] sm:$0xff]
        %v1175 = vld [vmem:[#allocation4 + $0x60] sm:$0xff]
        %v1176 = vld [vmem:[#allocation4 + $0x68] sm:$0xff]
        %v1177 = vld [vmem:[#allocation4 + $0x70] sm:$0xff]
        %v1178 = vld [vmem:[#allocation4 + $0x78] sm:$0xff]
        %1180 = vset.pattern.permute.xlu0 0
        %1181 = vperm.xlu0 %1180, %v849
        %v1182 = vpop.permute.xlu0 %1181
        %1185 = vset.pattern.permute.xlu0 0
        %1186 = vperm.xlu0 %1185, %v851
        %v1187 = vpop.permute.xlu0 %1186
        %1190 = vset.pattern.permute.xlu0 0
        %1191 = vperm.xlu0 %1190, %v853
        %v1192 = vpop.permute.xlu0 %1191
        %1195 = vset.pattern.permute.xlu0 0
        %1196 = vperm.xlu0 %1195, %v855
        %v1197 = vpop.permute.xlu0 %1196
        %1200 = vset.pattern.permute.xlu0 0
        %1201 = vperm.xlu0 %1200, %v857
        %v1202 = vpop.permute.xlu0 %1201
        %1205 = vset.pattern.permute.xlu0 0
        %1206 = vperm.xlu0 %1205, %v859
        %v1207 = vpop.permute.xlu0 %1206
        %1210 = vset.pattern.permute.xlu0 0
        %1211 = vperm.xlu0 %1210, %v861
        %v1212 = vpop.permute.xlu0 %1211
        %1215 = vset.pattern.permute.xlu0 0
        %1216 = vperm.xlu0 %1215, %v863
        %v1217 = vpop.permute.xlu0 %1216
        %1220 = vset.pattern.permute.xlu0 0
        %1221 = vperm.xlu0 %1220, %v865
        %v1222 = vpop.permute.xlu0 %1221
        %1225 = vset.pattern.permute.xlu0 0
        %1226 = vperm.xlu0 %1225, %v867
        %v1227 = vpop.permute.xlu0 %1226
        %1230 = vset.pattern.permute.xlu0 0
        %1231 = vperm.xlu0 %1230, %v869
        %v1232 = vpop.permute.xlu0 %1231
        %1235 = vset.pattern.permute.xlu0 0
        %1236 = vperm.xlu0 %1235, %v871
        %v1237 = vpop.permute.xlu0 %1236
        %1240 = vset.pattern.permute.xlu0 0
        %1241 = vperm.xlu0 %1240, %v873
        %v1242 = vpop.permute.xlu0 %1241
        %1245 = vset.pattern.permute.xlu0 0
        %1246 = vperm.xlu0 %1245, %v875
        %v1247 = vpop.permute.xlu0 %1246
        %1250 = vset.pattern.permute.xlu0 0
        %1251 = vperm.xlu0 %1250, %v877
        %v1252 = vpop.permute.xlu0 %1251
        %1255 = vset.pattern.permute.xlu0 0
        %1256 = vperm.xlu0 %1255, %v879
        %v1257 = vpop.permute.xlu0 %1256
        %v1259 = vmul.f32 %v1182, %v1163
        %v1260 = vmul.f32 %v1187, %v1164
        %v1261 = vmul.f32 %v1192, %v1165
        %v1262 = vmul.f32 %v1197, %v1166
        %v1263 = vmul.f32 %v1202, %v1167
        %v1264 = vmul.f32 %v1207, %v1168
        %v1265 = vmul.f32 %v1212, %v1169
        %v1266 = vmul.f32 %v1217, %v1170
        %v1267 = vmul.f32 %v1222, %v1171
        %v1268 = vmul.f32 %v1227, %v1172
        %v1269 = vmul.f32 %v1232, %v1173
        %v1270 = vmul.f32 %v1237, %v1174
        %v1271 = vmul.f32 %v1242, %v1175
        %v1272 = vmul.f32 %v1247, %v1176
        %v1273 = vmul.f32 %v1252, %v1177
        %v1274 = vmul.f32 %v1257, %v1178
        %v1275 = vadd.f32 %v1259, %v1124
        %v1276 = vadd.f32 %v1260, %v1126
        %v1277 = vadd.f32 %v1261, %v1129
        %v1278 = vadd.f32 %v1262, %v1131
        %v1279 = vadd.f32 %v1263, %v1134
        %v1280 = vadd.f32 %v1264, %v1136
        %v1281 = vadd.f32 %v1265, %v1139
        %v1282 = vadd.f32 %v1266, %v1141
        %v1283 = vadd.f32 %v1267, %v1144
        %v1284 = vadd.f32 %v1268, %v1146
        %v1285 = vadd.f32 %v1269, %v1149
        %v1286 = vadd.f32 %v1270, %v1151
        %v1287 = vadd.f32 %v1271, %v1154
        %v1288 = vadd.f32 %v1272, %v1156
        %v1289 = vadd.f32 %v1273, %v1159
        %v1290 = vadd.f32 %v1274, %v1161
        %1291 = vst.msk [vmem:[#allocation4] sm:$0xff] %vm691, %v1275
        %1292 = vst.msk [vmem:[#allocation4 + $0x8] sm:$0xff] %vm691, %v1276
        %1293 = vst.msk [vmem:[#allocation4 + $0x10] sm:$0xff] %vm691, %v1277
        %1294 = vst.msk [vmem:[#allocation4 + $0x18] sm:$0xff] %vm691, %v1278
        %1295 = vst.msk [vmem:[#allocation4 + $0x20] sm:$0xff] %vm691, %v1279
        %1296 = vst.msk [vmem:[#allocation4 + $0x28] sm:$0xff] %vm691, %v1280
        %1297 = vst.msk [vmem:[#allocation4 + $0x30] sm:$0xff] %vm691, %v1281
        %1298 = vst.msk [vmem:[#allocation4 + $0x38] sm:$0xff] %vm691, %v1282
        %1299 = vst.msk [vmem:[#allocation4 + $0x40] sm:$0xff] %vm691, %v1283
        %1300 = vst.msk [vmem:[#allocation4 + $0x48] sm:$0xff] %vm691, %v1284
        %1301 = vst.msk [vmem:[#allocation4 + $0x50] sm:$0xff] %vm691, %v1285
        %1302 = vst.msk [vmem:[#allocation4 + $0x58] sm:$0xff] %vm691, %v1286
        %1303 = vst.msk [vmem:[#allocation4 + $0x60] sm:$0xff] %vm691, %v1287
        %1304 = vst.msk [vmem:[#allocation4 + $0x68] sm:$0xff] %vm691, %v1288
        %1305 = vst.msk [vmem:[#allocation4 + $0x70] sm:$0xff] %vm691, %v1289
        %1306 = vst.msk [vmem:[#allocation4 + $0x78] sm:$0xff] %vm691, %v1290
        %1307 = vst.msk [vmem:[#allocation2] sm:$0xff] %vm1088, %v816
        %1308 = vst.msk [vmem:[#allocation2 + $0x8] sm:$0xff] %vm1088, %v817
        %1309 = vst.msk [vmem:[#allocation2 + $0x10] sm:$0xff] %vm1088, %v818
        %1310 = vst.msk [vmem:[#allocation2 + $0x18] sm:$0xff] %vm1088, %v819
        %1311 = vst.msk [vmem:[#allocation2 + $0x20] sm:$0xff] %vm1088, %v820
        %1312 = vst.msk [vmem:[#allocation2 + $0x28] sm:$0xff] %vm1088, %v821
        %1313 = vst.msk [vmem:[#allocation2 + $0x30] sm:$0xff] %vm1088, %v822
        %1314 = vst.msk [vmem:[#allocation2 + $0x38] sm:$0xff] %vm1088, %v823
        %1315 = vst.msk [vmem:[#allocation2 + $0x40] sm:$0xff] %vm1088, %v824
        %1316 = vst.msk [vmem:[#allocation2 + $0x48] sm:$0xff] %vm1088, %v825
        %1317 = vst.msk [vmem:[#allocation2 + $0x50] sm:$0xff] %vm1088, %v826
        %1318 = vst.msk [vmem:[#allocation2 + $0x58] sm:$0xff] %vm1088, %v827
        %1319 = vst.msk [vmem:[#allocation2 + $0x60] sm:$0xff] %vm1088, %v828
        %1320 = vst.msk [vmem:[#allocation2 + $0x68] sm:$0xff] %vm1088, %v829
        %1321 = vst.msk [vmem:[#allocation2 + $0x70] sm:$0xff] %vm1088, %v830
        %1322 = vst.msk [vmem:[#allocation2 + $0x78] sm:$0xff] %vm1088, %v831
        %p1323 = scmp.eq.s32.totalorder %s35, 1
        // Predicated region
        $region73: #{tpu_custom_call.1} parent=63 // pred_check
          %p1324 = pneg %p1323
        $region74: #{tpu_custom_call.1} parent=63 // pred_check_branch
          %1326 = sbr.rel (%p1324) target = $region76
        $region75: #{tpu_custom_call.1} parent=63 // pred_region
          %v1327 = vld [vmem:[#allocation4] sm:$0xff]
          %v1328 = vld [vmem:[#allocation4 + $0x8] sm:$0xff]
          %v1329 = vld [vmem:[#allocation4 + $0x10] sm:$0xff]
          %v1330 = vld [vmem:[#allocation4 + $0x18] sm:$0xff]
          %v1331 = vld [vmem:[#allocation4 + $0x20] sm:$0xff]
          %v1332 = vld [vmem:[#allocation4 + $0x28] sm:$0xff]
          %v1333 = vld [vmem:[#allocation4 + $0x30] sm:$0xff]
          %v1334 = vld [vmem:[#allocation4 + $0x38] sm:$0xff]
          %v1335 = vld [vmem:[#allocation4 + $0x40] sm:$0xff]
          %v1336 = vld [vmem:[#allocation4 + $0x48] sm:$0xff]
          %v1337 = vld [vmem:[#allocation4 + $0x50] sm:$0xff]
          %v1338 = vld [vmem:[#allocation4 + $0x58] sm:$0xff]
          %v1339 = vld [vmem:[#allocation4 + $0x60] sm:$0xff]
          %v1340 = vld [vmem:[#allocation4 + $0x68] sm:$0xff]
          %v1341 = vld [vmem:[#allocation4 + $0x70] sm:$0xff]
          %v1342 = vld [vmem:[#allocation4 + $0x78] sm:$0xff]
          %v1343 = vld [vmem:[#allocation3] sm:$0xff]
          %v1344 = vld [vmem:[#allocation3 + $0x8] sm:$0xff]
          %v1345 = vld [vmem:[#allocation3 + $0x10] sm:$0xff]
          %v1346 = vld [vmem:[#allocation3 + $0x18] sm:$0xff]
          %v1347 = vld [vmem:[#allocation3 + $0x20] sm:$0xff]
          %v1348 = vld [vmem:[#allocation3 + $0x28] sm:$0xff]
          %v1349 = vld [vmem:[#allocation3 + $0x30] sm:$0xff]
          %v1350 = vld [vmem:[#allocation3 + $0x38] sm:$0xff]
          %v1351 = vld [vmem:[#allocation3 + $0x40] sm:$0xff]
          %v1352 = vld [vmem:[#allocation3 + $0x48] sm:$0xff]
          %v1353 = vld [vmem:[#allocation3 + $0x50] sm:$0xff]
          %v1354 = vld [vmem:[#allocation3 + $0x58] sm:$0xff]
          %v1355 = vld [vmem:[#allocation3 + $0x60] sm:$0xff]
          %v1356 = vld [vmem:[#allocation3 + $0x68] sm:$0xff]
          %v1357 = vld [vmem:[#allocation3 + $0x70] sm:$0xff]
          %v1358 = vld [vmem:[#allocation3 + $0x78] sm:$0xff]
          %v1359 = vrcp.pop %v1343
          %v1360 = vrcp.pop %v1344
          %v1361 = vrcp.pop %v1345
          %v1362 = vrcp.pop %v1346
          %v1363 = vrcp.pop %v1347
          %v1364 = vrcp.pop %v1348
          %v1365 = vrcp.pop %v1349
          %v1366 = vrcp.pop %v1350
          %v1367 = vrcp.pop %v1351
          %v1368 = vrcp.pop %v1352
          %v1369 = vrcp.pop %v1353
          %v1370 = vrcp.pop %v1354
          %v1371 = vrcp.pop %v1355
          %v1372 = vrcp.pop %v1356
          %v1373 = vrcp.pop %v1357
          %v1374 = vrcp.pop %v1358
          %1376 = vset.pattern.permute.xlu0 0
          %1377 = vperm.xlu0 %1376, %v1359
          %v1378 = vpop.permute.xlu0 %1377
          %1381 = vset.pattern.permute.xlu0 0
          %1382 = vperm.xlu0 %1381, %v1360
          %v1383 = vpop.permute.xlu0 %1382
          %1386 = vset.pattern.permute.xlu0 0
          %1387 = vperm.xlu0 %1386, %v1361
          %v1388 = vpop.permute.xlu0 %1387
          %1391 = vset.pattern.permute.xlu0 0
          %1392 = vperm.xlu0 %1391, %v1362
          %v1393 = vpop.permute.xlu0 %1392
          %1396 = vset.pattern.permute.xlu0 0
          %1397 = vperm.xlu0 %1396, %v1363
          %v1398 = vpop.permute.xlu0 %1397
          %1401 = vset.pattern.permute.xlu0 0
          %1402 = vperm.xlu0 %1401, %v1364
          %v1403 = vpop.permute.xlu0 %1402
          %1406 = vset.pattern.permute.xlu0 0
          %1407 = vperm.xlu0 %1406, %v1365
          %v1408 = vpop.permute.xlu0 %1407
          %1411 = vset.pattern.permute.xlu0 0
          %1412 = vperm.xlu0 %1411, %v1366
          %v1413 = vpop.permute.xlu0 %1412
          %1416 = vset.pattern.permute.xlu0 0
          %1417 = vperm.xlu0 %1416, %v1367
          %v1418 = vpop.permute.xlu0 %1417
          %1421 = vset.pattern.permute.xlu0 0
          %1422 = vperm.xlu0 %1421, %v1368
          %v1423 = vpop.permute.xlu0 %1422
          %1426 = vset.pattern.permute.xlu0 0
          %1427 = vperm.xlu0 %1426, %v1369
          %v1428 = vpop.permute.xlu0 %1427
          %1431 = vset.pattern.permute.xlu0 0
          %1432 = vperm.xlu0 %1431, %v1370
          %v1433 = vpop.permute.xlu0 %1432
          %1436 = vset.pattern.permute.xlu0 0
          %1437 = vperm.xlu0 %1436, %v1371
          %v1438 = vpop.permute.xlu0 %1437
          %1441 = vset.pattern.permute.xlu0 0
          %1442 = vperm.xlu0 %1441, %v1372
          %v1443 = vpop.permute.xlu0 %1442
          %1446 = vset.pattern.permute.xlu0 0
          %1447 = vperm.xlu0 %1446, %v1373
          %v1448 = vpop.permute.xlu0 %1447
          %1451 = vset.pattern.permute.xlu0 0
          %1452 = vperm.xlu0 %1451, %v1374
          %v1453 = vpop.permute.xlu0 %1452
          %v1455 = vmul.f32 %v1327, %v1378
          %v1456 = vmul.f32 %v1328, %v1383
          %v1457 = vmul.f32 %v1329, %v1388
          %v1458 = vmul.f32 %v1330, %v1393
          %v1459 = vmul.f32 %v1331, %v1398
          %v1460 = vmul.f32 %v1332, %v1403
          %v1461 = vmul.f32 %v1333, %v1408
          %v1462 = vmul.f32 %v1334, %v1413
          %v1463 = vmul.f32 %v1335, %v1418
          %v1464 = vmul.f32 %v1336, %v1423
          %v1465 = vmul.f32 %v1337, %v1428
          %v1466 = vmul.f32 %v1338, %v1433
          %v1467 = vmul.f32 %v1339, %v1438
          %v1468 = vmul.f32 %v1340, %v1443
          %v1469 = vmul.f32 %v1341, %v1448
          %v1470 = vmul.f32 %v1342, %v1453
          %v1471 = vld [vmem:[%s9] sm:$0xf]
          %v1472 = vld [vmem:[%s10] sm:$0xf]
          %1474 = vset.pattern.permute.xlu0 0
          %1475 = vperm.xlu0 %1474, %v1472
          %v1476 = vpop.permute.xlu0 %1475
          %v1479 = vsel %vm691, %v1471, 0
          %v1482 = vsel %vm691, %v1455, 0
          %v1485 = vsel %vm691, %v1456, 0
          %v1488 = vsel %vm691, %v1457, 0
          %v1491 = vsel %vm691, %v1458, 0
          %v1494 = vsel %vm691, %v1459, 0
          %v1497 = vsel %vm691, %v1460, 0
          %v1500 = vsel %vm691, %v1461, 0
          %v1503 = vsel %vm691, %v1462, 0
          %v1506 = vsel %vm691, %v1463, 0
          %v1509 = vsel %vm691, %v1464, 0
          %v1512 = vsel %vm691, %v1465, 0
          %v1515 = vsel %vm691, %v1466, 0
          %v1518 = vsel %vm691, %v1467, 0
          %v1521 = vsel %vm691, %v1468, 0
          %v1524 = vsel %vm691, %v1469, 0
          %v1527 = vsel %vm691, %v1470, 0
          %1529 = vmatpush.xpose.msra.mxu0 %v1527
          %1530 = vmatpush.xpose.msra.mxu0 %v1524
          %1531 = vmatpush.xpose.msra.mxu0 %v1521
          %1532 = vmatpush.xpose.msra.mxu0 %v1518
          %1533 = vmatpush.xpose.msra.mxu0 %v1515
          %1534 = vmatpush.xpose.msra.mxu0 %v1512
          %1535 = vmatpush.xpose.msra.mxu0 %v1509
          %1536 = vmatpush.xpose.msra.mxu0 %v1506
          %1537 = vmatpush.xpose.msra.mxu0 %v1503
          %1538 = vmatpush.xpose.msra.mxu0 %v1500
          %1539 = vmatpush.xpose.msra.mxu0 %v1497
          %1540 = vmatpush.xpose.msra.mxu0 %v1494
          %1541 = vmatpush.xpose.msra.mxu0 %v1491
          %1542 = vmatpush.xpose.msra.mxu0 %v1488
          %1543 = vmatpush.xpose.msra.mxu0 %v1485
          %1544 = vmatpush.xpose.msra.mxu0 %v1482
          %1545 = vmatmul.f32.gmra.mxu0 %v1479
          %v1546 = vpop.f32.mrf.mxu0
          %v1547 = vadd.f32 %v1476, %v1546
          %1548 = vdwg.mxu0
          %v1549 = vld [vmem:[%s482] sm:$0xf]
          %v1550 = vadd.f32 %v1547, %v1549
          %1551 = vst [vmem:[%s474] sm:$0xf] %v1550
        $region76: #{tpu_custom_call.1} parent=63 // pred_fallthru
          _
        %s1552 = sand.u32 %s309, 1
        %s1553 = scalar_lea.sflag [#allocation7], %s1552
        %s1554 = sand.u32 %s309, 1
        %s1555 = smul.addr %s1554, 4
        %s1556 = scalar_lea.vmem [#allocation8], %s1555
        // Predicated region
        $region77: #{tpu_custom_call.1} parent=63 // pred_check
          %p1557 = pneg %p319
        $region78: #{tpu_custom_call.1} parent=63 // pred_check_branch
          %1559 = sbr.rel (%p1557) target = $region80
        $region79: #{tpu_custom_call.1} parent=63 // pred_region
          %1561 = vsyncadd %s1553, 0
          %s1562 = smul.addr %s33, 2
          %s1563 = sadd.s32 %s34, %s1562
          %s1564 = smul.addr %s1563, 4
          %s1565 = scalar_lea.hbm %s11, %s1564
          %s1567 = sshll.u32 %s1556, 4
          %s1568 = int_to_ptr.vmem [resolvable:$true] %s1567
          %s1569 = sshll.u32 %s1565, 4
          %s1570 = int_to_ptr.hbm [resolvable:$true] %s1569
          %1572 = dma.vmem_to_hbm [thread:$0]  %s1568, 64, %s1570, %s1553
        $region80: #{tpu_custom_call.1} parent=63 // pred_fallthru
          _
      $region64: #{tpu_custom_call.1} parent=5 // pred_fallthru
        _
      %p1573 = scmp.le.s32.totalorder 2, %s23
      // Predicated region
      $region81: #{tpu_custom_call.1} parent=5 // pred_check
        %p1574 = pneg %p1573
      $region82: #{tpu_custom_call.1} parent=5 // pred_check_branch
        %1576 = sbr.rel (%p1574) target = $region84
      $region83: #{tpu_custom_call.1} parent=5 // pred_region
        %s1577 = ssub.s32 %s23, 2
        // Predicated region
        $region85: #{tpu_custom_call.1} parent=83 // pred_check
          %p1578 = pneg %p325
        $region86: #{tpu_custom_call.1} parent=83 // pred_check_branch
          %1580 = sbr.rel (%p1578) target = $region88
        $region87: #{tpu_custom_call.1} parent=83 // pred_region
          %s1581 = sand.u32 %s310, 1
          %s1582 = scalar_lea.sflag [#allocation7], %s1581
          %s1583 = sand.u32 %s310, 1
          %s1584 = smul.addr %s1583, 4
          %s1585 = scalar_lea.vmem [#allocation8], %s1584
          %1587 = dma.done %s1582, 64
        $region88: #{tpu_custom_call.1} parent=83 // pred_fallthru
          _
      $region84: #{tpu_custom_call.1} parent=5 // pred_fallthru
        _
    $region6: #{tpu_custom_call.1} parent=1 // loop_footer
      %s27 = sadd.s32 1, %s23
    $region7: #{tpu_custom_call.1} parent=1 // loop_footer_branch
      %22 = sbr.rel target = $region3
    $region8: #{tpu_custom_call.1} parent=1 // loop_exit
      _
    %1588 = vsyncpa [#allocation6], 1
    %s1589 = scalar_lea.sflag [#allocation6], 1
    %1590 = vsyncpa %s1589, 1
    %1591 = vsyncpa [#allocation7], 1
    %s1592 = scalar_lea.sflag [#allocation7], 1
    %1593 = vsyncpa %s1592, 1

</llo_original>
